<compile_context>
chip_gen: v7x
topology: tpu7x:2x2x1
jax: 0.10.0
libtpu: 0.0.40
codegen_flags: <defaults>
</compile_context>

<pallas_src>
import functools

import jax
import jax.numpy as jnp
from jax.experimental import pallas as pl
from jax.experimental.pallas import tpu as pltpu


def _make_kernel(pool, Hp, Wp, Cin, Cout):
    """Kernel for one batch element.

    x_ref  : (1, Hp, PH, Wp, PW*Cin)  pooling pairs pre-split by a free reshape
                                      (PH=PW=2 if pooling, else 1)
    w*_ref : (9*Cin_conv, Cout)       im2col-flattened weights, (dy, dx, c) order
    b*_ref : (1, Cout)
    o_ref  : (1, Hp*Wp, Cout)         matmul-layout output (wrapper un-flattens)
    """
    R = Hp * Wp

    def conv3x3_relu(inp, pad_ref, col_ref, w_ref, b_ref, cin):
        """inp: (Hp, Wp, cin) value.  Returns (R, Cout) float32 post-ReLU."""
        dt = pad_ref.dtype
        # Zero only the 1-px border of the padded scratch; the interior is
        # fully overwritten just below (no full-tile zero fill).
        pad_ref[0:1, :, :] = jnp.zeros((1, Wp + 2, cin), dt)
        pad_ref[Hp + 1:Hp + 2, :, :] = jnp.zeros((1, Wp + 2, cin), dt)
        pad_ref[1:Hp + 1, 0:1, :] = jnp.zeros((Hp, 1, cin), dt)
        pad_ref[1:Hp + 1, Wp + 1:Wp + 2, :] = jnp.zeros((Hp, 1, cin), dt)
        pad_ref[1:Hp + 1, 1:Wp + 1, :] = inp

        # im2col build: 9 statically-offset window copies (ref slices of the
        # padded scratch), so the whole conv is a single MXU matmul with a
        # fused (taps x channels) contraction dim.
        for t, (dy, dx) in enumerate(
                (dy, dx) for dy in range(3) for dx in range(3)):
            win = pad_ref[dy:dy + Hp, dx:dx + Wp, :].reshape(R, cin)
            col_ref[:, t * cin:(t + 1) * cin] = win

        acc = jnp.dot(col_ref[...], w_ref[...],
                      preferred_element_type=jnp.float32)       # (R, Cout) f32
        return jnp.maximum(acc + b_ref[...], 0.0)               # bias + ReLU

    def kernel(x_ref, w1_ref, b1_ref, w2_ref, b2_ref, o_ref,
               pad1_ref, col1_ref, pad2_ref, col2_ref):
        x = x_ref[0]                                   # (Hp, PH, Wp, PW*Cin)
        if pool:
            # 2x2 max-pool: H pairs on the PH axis, W pairs packed on the
            # lane axis (2*Cin) by the wrapper's zero-copy reshape.
            hmax = jnp.maximum(x[:, 0], x[:, 1])       # (Hp, Wp, 2*Cin)
            p = jnp.maximum(hmax[:, :, :Cin], hmax[:, :, Cin:])   # (Hp, Wp, Cin)
        else:
            p = x[:, 0]                                # (Hp, Wp, Cin)

        h1 = conv3x3_relu(p, pad1_ref, col1_ref, w1_ref, b1_ref, Cin)
        h1 = h1.reshape(Hp, Wp, Cout)                  # stays in VMEM / vregs
        if h1.dtype != pad2_ref.dtype:
            h1 = h1.astype(pad2_ref.dtype)
        h2 = conv3x3_relu(h1, pad2_ref, col2_ref, w2_ref, b2_ref, Cout)

        # Single HBM store, directly in the (R, Cout) matmul layout.
        o_ref[0] = h2 if h2.dtype == o_ref.dtype else h2.astype(o_ref.dtype)

    return kernel


@functools.partial(jax.jit, static_argnames=("is_pool",))
def downsample_pallas(x_nchw, w1, b1, w2, b2, is_pool=True):
    """Forward pass of Downsample. x_nchw: (B, Cin, H, W); weights OIHW."""
    B, Cin, H, W = x_nchw.shape
    Cout = w1.shape[0]
    if is_pool and (H % 2 or W % 2):
        raise ValueError(f"is_pool=True requires even H, W (got {H}x{W}) "
                         "to match nn.MaxPool2d(kernel_size=2).")

    # NCHW -> NHWC (one relayout).  The pooling-window split below only
    # splits/merges contiguous trailing dims, so it is a free view: no second
    # HBM pass for the input.
    x = jnp.transpose(x_nchw, (0, 2, 3, 1))                       # (B, H, W, Cin)
    if is_pool:
        Hp, Wp, PH, PWC = H // 2, W // 2, 2, 2 * Cin
    else:
        Hp, Wp, PH, PWC = H, W, 1, Cin
    xs = x.reshape(B, Hp, PH, Wp, PWC)

    # OIHW -> im2col weight matrices, flattened in (dy, dx, cin) order to
    # match the kernel's im2col column layout.
    w1m = jnp.transpose(w1, (2, 3, 1, 0)).reshape(9 * Cin, Cout)
    w2m = jnp.transpose(w2, (2, 3, 1, 0)).reshape(9 * Cout, Cout)
    b1r = b1.reshape(1, Cout)
    b2r = b2.reshape(1, Cout)

    dt = x.dtype
    kernel = _make_kernel(is_pool, Hp, Wp, Cin, Cout)

    out = pl.pallas_call(
        kernel,
        out_shape=jax.ShapeDtypeStruct((B, Hp * Wp, Cout), dt),
        grid=(B,),
        in_specs=[
            pl.BlockSpec((1, Hp, PH, Wp, PWC), lambda b: (b, 0, 0, 0, 0)),
            pl.BlockSpec((9 * Cin, Cout), lambda b: (0, 0)),
            pl.BlockSpec((1, Cout), lambda b: (0, 0)),
            pl.BlockSpec((9 * Cout, Cout), lambda b: (0, 0)),
            pl.BlockSpec((1, Cout), lambda b: (0, 0)),
        ],
        out_specs=pl.BlockSpec((1, Hp * Wp, Cout), lambda b: (b, 0, 0)),
        scratch_shapes=[
            pltpu.VMEM((Hp + 2, Wp + 2, Cin), dt),      # padded conv1 input
            pltpu.VMEM((Hp * Wp, 9 * Cin), dt),         # im2col for conv1
            pltpu.VMEM((Hp + 2, Wp + 2, Cout), dt),     # padded conv2 input
            pltpu.VMEM((Hp * Wp, 9 * Cout), dt),        # im2col for conv2
        ],
        compiler_params=pltpu.CompilerParams(
            dimension_semantics=("parallel",)),
    )(xs, w1m, b1r, w2m, b2r)

    # (B, Hp*Wp, Cout) -> NCHW
    return jnp.transpose(out.reshape(B, Hp, Wp, Cout), (0, 3, 1, 2))


def downsample_ref(x, w1, b1, w2, b2, is_pool=True):
    """Pure-JAX reference matching PyTorch semantics (NCHW)."""
    if is_pool:
        x = jax.lax.reduce_window(x, -jnp.inf, jax.lax.max,
                                  (1, 1, 2, 2), (1, 1, 2, 2), "VALID")

    def conv_relu(x, w, b):
        y = jax.lax.conv_general_dilated(
            x, w, window_strides=(1, 1), padding=((1, 1), (1, 1)),
            dimension_numbers=("NCHW", "OIHW", "NCHW"))
        return jnp.maximum(y + b[None, :, None, None], 0.0)

    x = conv_relu(x, w1, b1)
    x = conv_relu(x, w2, b2)
    return x


if __name__ == "__main__":
    B, Cin, Cout, H, W = 2, 4, 8, 16, 16

    key = jax.random.PRNGKey(0)
    kx, k1, k2, k3, k4 = jax.random.split(key, 5)
    x = jax.random.normal(kx, (B, Cin, H, W), jnp.float32)
    # deterministic synthetic parameters (shapes per nn.Conv2d in __init__)
    w1 = 0.1 * jax.random.normal(k1, (Cout, Cin, 3, 3), jnp.float32)
    b1 = 0.1 * jax.random.normal(k2, (Cout,), jnp.float32)
    w2 = 0.1 * jax.random.normal(k3, (Cout, Cout, 3, 3), jnp.float32)
    b2 = 0.1 * jax.random.normal(k4, (Cout,), jnp.float32)

    # is_pool=True (default path)
    out = jax.block_until_ready(downsample_pallas(x, w1, b1, w2, b2, is_pool=True))
    ref = downsample_ref(x, w1, b1, w2, b2, True)
    assert out.shape == (B, Cout, H // 2, W // 2), out.shape
    assert jnp.allclose(out, ref, atol=1e-5, rtol=1e-5), "mismatch (is_pool=True)"

    # is_pool=False path
    out2 = jax.block_until_ready(downsample_pallas(x, w1, b1, w2, b2, is_pool=False))
    ref2 = downsample_ref(x, w1, b1, w2, b2, False)
    assert out2.shape == (B, Cout, H, W), out2.shape
    assert jnp.allclose(out2, ref2, atol=1e-5, rtol=1e-5), "mismatch (is_pool=False)"

    print("KERNEL_OK")
</pallas_src>

<mosaic_0001>
module attributes {stable_mosaic.version = 11 : i64} {
  func.func @kernel(%arg0: i32, %arg1: memref<1x8x2x8x8xf32, #tpu.memory_space<vmem>>, %arg2: memref<36x8xf32, #tpu.memory_space<vmem>>, %arg3: memref<1x8xf32, #tpu.memory_space<vmem>>, %arg4: memref<72x8xf32, #tpu.memory_space<vmem>>, %arg5: memref<1x8xf32, #tpu.memory_space<vmem>>, %arg6: memref<1x64x8xf32, #tpu.memory_space<vmem>>, %arg7: memref<10x10x4xf32, #tpu.memory_space<vmem>>, %arg8: memref<64x36xf32, #tpu.memory_space<vmem>>, %arg9: memref<10x10x8xf32, #tpu.memory_space<vmem>>, %arg10: memref<64x72xf32, #tpu.memory_space<vmem>>) attributes {dimension_semantics = [#tpu.dimension_semantics<parallel>], iteration_bounds = array<i64: 2>, scalar_prefetch = 0 : i64, scratch_operands = 4 : i64, tpu.core_type = #tpu.core_type<tc>, window_params = [{transform_indices = @transform_0, window_bounds = array<i64: 1, 8, 2, 8, 8>}, {pipeline_mode = #tpu.pipeline_mode<synchronous>, transform_indices = @transform_1, window_bounds = array<i64: 36, 8>}, {pipeline_mode = #tpu.pipeline_mode<synchronous>, transform_indices = @transform_2, window_bounds = array<i64: 1, 8>}, {pipeline_mode = #tpu.pipeline_mode<synchronous>, transform_indices = @transform_3, window_bounds = array<i64: 72, 8>}, {pipeline_mode = #tpu.pipeline_mode<synchronous>, transform_indices = @transform_4, window_bounds = array<i64: 1, 8>}, {transform_indices = @transform_5, window_bounds = array<i64: 1, 64, 8>}]} {
    %c0 = arith.constant 0 : index
    %c0_0 = arith.constant 0 : index
    %c0_1 = arith.constant 0 : index
    %c0_2 = arith.constant 0 : index
    %c0_3 = arith.constant 0 : index
    %0 = vector.load %arg1[%c0, %c0_0, %c0_1, %c0_2, %c0_3] : memref<1x8x2x8x8xf32, #tpu.memory_space<vmem>>, vector<1x8x2x8x8xf32>
    %1 = vector.shape_cast %0 : vector<1x8x2x8x8xf32> to vector<8x2x8x8xf32>
    %2 = vector.extract_strided_slice %1 {offsets = [0, 0, 0, 0], sizes = [8, 1, 8, 8], strides = [1, 1, 1, 1]} : vector<8x2x8x8xf32> to vector<8x1x8x8xf32>
    %3 = vector.shape_cast %2 : vector<8x1x8x8xf32> to vector<8x8x8xf32>
    %4 = vector.extract_strided_slice %1 {offsets = [0, 1, 0, 0], sizes = [8, 1, 8, 8], strides = [1, 1, 1, 1]} : vector<8x2x8x8xf32> to vector<8x1x8x8xf32>
    %5 = vector.shape_cast %4 : vector<8x1x8x8xf32> to vector<8x8x8xf32>
    %6 = arith.maximumf %3, %5 : vector<8x8x8xf32>
    %7 = vector.extract_strided_slice %6 {offsets = [0, 0, 0], sizes = [8, 8, 4], strides = [1, 1, 1]} : vector<8x8x8xf32> to vector<8x8x4xf32>
    %8 = vector.extract_strided_slice %6 {offsets = [0, 0, 4], sizes = [8, 8, 4], strides = [1, 1, 1]} : vector<8x8x8xf32> to vector<8x8x4xf32>
    %9 = arith.maximumf %7, %8 : vector<8x8x4xf32>
    %cst = arith.constant 0.000000e+00 : f32
    %10 = vector.broadcast %cst : f32 to vector<1x10x4xf32>
    %c0_4 = arith.constant 0 : index
    %c0_5 = arith.constant 0 : index
    %c0_6 = arith.constant 0 : index
    %11 = vector.load %arg7[%c0_4, %c0_5, %c0_6] : memref<10x10x4xf32, #tpu.memory_space<vmem>>, vector<1x10x4xf32>
    tpu.vector_store %arg7[%c0_4, %c0_5, %c0_6], %10 {strides = array<i32>} : memref<10x10x4xf32, #tpu.memory_space<vmem>>, vector<1x10x4xf32>,
    %cst_7 = arith.constant 0.000000e+00 : f32
    %12 = vector.broadcast %cst_7 : f32 to vector<1x10x4xf32>
    %c9 = arith.constant 9 : index
    %c0_8 = arith.constant 0 : index
    %c0_9 = arith.constant 0 : index
    %13 = vector.load %arg7[%c9, %c0_8, %c0_9] : memref<10x10x4xf32, #tpu.memory_space<vmem>>, vector<1x10x4xf32>
    tpu.vector_store %arg7[%c9, %c0_8, %c0_9], %12 {strides = array<i32>} : memref<10x10x4xf32, #tpu.memory_space<vmem>>, vector<1x10x4xf32>,
    %cst_10 = arith.constant 0.000000e+00 : f32
    %14 = vector.broadcast %cst_10 : f32 to vector<8x1x4xf32>
    %c1 = arith.constant 1 : index
    %c0_11 = arith.constant 0 : index
    %c0_12 = arith.constant 0 : index
    %15 = vector.load %arg7[%c1, %c0_11, %c0_12] : memref<10x10x4xf32, #tpu.memory_space<vmem>>, vector<8x1x4xf32>
    tpu.vector_store %arg7[%c1, %c0_11, %c0_12], %14 {strides = array<i32>} : memref<10x10x4xf32, #tpu.memory_space<vmem>>, vector<8x1x4xf32>,
    %cst_13 = arith.constant 0.000000e+00 : f32
    %16 = vector.broadcast %cst_13 : f32 to vector<8x1x4xf32>
    %c1_14 = arith.constant 1 : index
    %c9_15 = arith.constant 9 : index
    %c0_16 = arith.constant 0 : index
    %17 = vector.load %arg7[%c1_14, %c9_15, %c0_16] : memref<10x10x4xf32, #tpu.memory_space<vmem>>, vector<8x1x4xf32>
    tpu.vector_store %arg7[%c1_14, %c9_15, %c0_16], %16 {strides = array<i32>} : memref<10x10x4xf32, #tpu.memory_space<vmem>>, vector<8x1x4xf32>,
    %c1_17 = arith.constant 1 : index
    %c1_18 = arith.constant 1 : index
    %c0_19 = arith.constant 0 : index
    %18 = vector.load %arg7[%c1_17, %c1_18, %c0_19] : memref<10x10x4xf32, #tpu.memory_space<vmem>>, vector<8x8x4xf32>
    tpu.vector_store %arg7[%c1_17, %c1_18, %c0_19], %9 {strides = array<i32>} : memref<10x10x4xf32, #tpu.memory_space<vmem>>, vector<8x8x4xf32>,
    %c0_20 = arith.constant 0 : index
    %c0_21 = arith.constant 0 : index
    %c0_22 = arith.constant 0 : index
    %19 = vector.load %arg7[%c0_20, %c0_21, %c0_22] : memref<10x10x4xf32, #tpu.memory_space<vmem>>, vector<8x8x4xf32>
    %20 = vector.shape_cast %19 : vector<8x8x4xf32> to vector<64x4xf32>
    %c0_23 = arith.constant 0 : index
    %c0_24 = arith.constant 0 : index
    %21 = vector.load %arg8[%c0_23, %c0_24] : memref<64x36xf32, #tpu.memory_space<vmem>>, vector<64x4xf32>
    tpu.vector_store %arg8[%c0_23, %c0_24], %20 {strides = array<i32>} : memref<64x36xf32, #tpu.memory_space<vmem>>, vector<64x4xf32>,
    %c0_25 = arith.constant 0 : index
    %c1_26 = arith.constant 1 : index
    %c0_27 = arith.constant 0 : index
    %22 = vector.load %arg7[%c0_25, %c1_26, %c0_27] : memref<10x10x4xf32, #tpu.memory_space<vmem>>, vector<8x8x4xf32>
    %23 = vector.shape_cast %22 : vector<8x8x4xf32> to vector<64x4xf32>
    %c0_28 = arith.constant 0 : index
    %c4 = arith.constant 4 : index
    %24 = vector.load %arg8[%c0_28, %c4] : memref<64x36xf32, #tpu.memory_space<vmem>>, vector<64x4xf32>
    tpu.vector_store %arg8[%c0_28, %c4], %23 {strides = array<i32>} : memref<64x36xf32, #tpu.memory_space<vmem>>, vector<64x4xf32>,
    %c0_29 = arith.constant 0 : index
    %c2 = arith.constant 2 : index
    %c0_30 = arith.constant 0 : index
    %25 = vector.load %arg7[%c0_29, %c2, %c0_30] : memref<10x10x4xf32, #tpu.memory_space<vmem>>, vector<8x8x4xf32>
    %26 = vector.shape_cast %25 : vector<8x8x4xf32> to vector<64x4xf32>
    %c0_31 = arith.constant 0 : index
    %c8 = arith.constant 8 : index
    %27 = vector.load %arg8[%c0_31, %c8] : memref<64x36xf32, #tpu.memory_space<vmem>>, vector<64x4xf32>
    tpu.vector_store %arg8[%c0_31, %c8], %26 {strides = array<i32>} : memref<64x36xf32, #tpu.memory_space<vmem>>, vector<64x4xf32>,
    %c1_32 = arith.constant 1 : index
    %c0_33 = arith.constant 0 : index
    %c0_34 = arith.constant 0 : index
    %28 = vector.load %arg7[%c1_32, %c0_33, %c0_34] : memref<10x10x4xf32, #tpu.memory_space<vmem>>, vector<8x8x4xf32>
    %29 = vector.shape_cast %28 : vector<8x8x4xf32> to vector<64x4xf32>
    %c0_35 = arith.constant 0 : index
    %c12 = arith.constant 12 : index
    %30 = vector.load %arg8[%c0_35, %c12] : memref<64x36xf32, #tpu.memory_space<vmem>>, vector<64x4xf32>
    tpu.vector_store %arg8[%c0_35, %c12], %29 {strides = array<i32>} : memref<64x36xf32, #tpu.memory_space<vmem>>, vector<64x4xf32>,
    %c1_36 = arith.constant 1 : index
    %c1_37 = arith.constant 1 : index
    %c0_38 = arith.constant 0 : index
    %31 = vector.load %arg7[%c1_36, %c1_37, %c0_38] : memref<10x10x4xf32, #tpu.memory_space<vmem>>, vector<8x8x4xf32>
    %32 = vector.shape_cast %31 : vector<8x8x4xf32> to vector<64x4xf32>
    %c0_39 = arith.constant 0 : index
    %c16 = arith.constant 16 : index
    %33 = vector.load %arg8[%c0_39, %c16] : memref<64x36xf32, #tpu.memory_space<vmem>>, vector<64x4xf32>
    tpu.vector_store %arg8[%c0_39, %c16], %32 {strides = array<i32>} : memref<64x36xf32, #tpu.memory_space<vmem>>, vector<64x4xf32>,
    %c1_40 = arith.constant 1 : index
    %c2_41 = arith.constant 2 : index
    %c0_42 = arith.constant 0 : index
    %34 = vector.load %arg7[%c1_40, %c2_41, %c0_42] : memref<10x10x4xf32, #tpu.memory_space<vmem>>, vector<8x8x4xf32>
    %35 = vector.shape_cast %34 : vector<8x8x4xf32> to vector<64x4xf32>
    %c0_43 = arith.constant 0 : index
    %c20 = arith.constant 20 : index
    %36 = vector.load %arg8[%c0_43, %c20] : memref<64x36xf32, #tpu.memory_space<vmem>>, vector<64x4xf32>
    tpu.vector_store %arg8[%c0_43, %c20], %35 {strides = array<i32>} : memref<64x36xf32, #tpu.memory_space<vmem>>, vector<64x4xf32>,
    %c2_44 = arith.constant 2 : index
    %c0_45 = arith.constant 0 : index
    %c0_46 = arith.constant 0 : index
    %37 = vector.load %arg7[%c2_44, %c0_45, %c0_46] : memref<10x10x4xf32, #tpu.memory_space<vmem>>, vector<8x8x4xf32>
    %38 = vector.shape_cast %37 : vector<8x8x4xf32> to vector<64x4xf32>
    %c0_47 = arith.constant 0 : index
    %c24 = arith.constant 24 : index
    %39 = vector.load %arg8[%c0_47, %c24] : memref<64x36xf32, #tpu.memory_space<vmem>>, vector<64x4xf32>
    tpu.vector_store %arg8[%c0_47, %c24], %38 {strides = array<i32>} : memref<64x36xf32, #tpu.memory_space<vmem>>, vector<64x4xf32>,
    %c2_48 = arith.constant 2 : index
    %c1_49 = arith.constant 1 : index
    %c0_50 = arith.constant 0 : index
    %40 = vector.load %arg7[%c2_48, %c1_49, %c0_50] : memref<10x10x4xf32, #tpu.memory_space<vmem>>, vector<8x8x4xf32>
    %41 = vector.shape_cast %40 : vector<8x8x4xf32> to vector<64x4xf32>
    %c0_51 = arith.constant 0 : index
    %c28 = arith.constant 28 : index
    %42 = vector.load %arg8[%c0_51, %c28] : memref<64x36xf32, #tpu.memory_space<vmem>>, vector<64x4xf32>
    tpu.vector_store %arg8[%c0_51, %c28], %41 {strides = array<i32>} : memref<64x36xf32, #tpu.memory_space<vmem>>, vector<64x4xf32>,
    %c2_52 = arith.constant 2 : index
    %c2_53 = arith.constant 2 : index
    %c0_54 = arith.constant 0 : index
    %43 = vector.load %arg7[%c2_52, %c2_53, %c0_54] : memref<10x10x4xf32, #tpu.memory_space<vmem>>, vector<8x8x4xf32>
    %44 = vector.shape_cast %43 : vector<8x8x4xf32> to vector<64x4xf32>
    %c0_55 = arith.constant 0 : index
    %c32 = arith.constant 32 : index
    %45 = vector.load %arg8[%c0_55, %c32] : memref<64x36xf32, #tpu.memory_space<vmem>>, vector<64x4xf32>
    tpu.vector_store %arg8[%c0_55, %c32], %44 {strides = array<i32>} : memref<64x36xf32, #tpu.memory_space<vmem>>, vector<64x4xf32>,
    %c0_56 = arith.constant 0 : index
    %c0_57 = arith.constant 0 : index
    %46 = vector.load %arg8[%c0_56, %c0_57] : memref<64x36xf32, #tpu.memory_space<vmem>>, vector<64x36xf32>
    %c0_58 = arith.constant 0 : index
    %c0_59 = arith.constant 0 : index
    %47 = vector.load %arg2[%c0_58, %c0_59] : memref<36x8xf32, #tpu.memory_space<vmem>>, vector<36x8xf32>
    %cst_60 = arith.constant dense<0.000000e+00> : vector<64x8xf32>
    %48 = tpu.matmul %46, %47, %cst_60 {dimension_numbers = #tpu.dot_dimension_numbers<[1], [0], [0], [1], [0, 0, 1, 1], [], []>} : vector<64x36xf32>, vector<36x8xf32>, vector<64x8xf32> -> vector<64x8xf32>
    %c0_61 = arith.constant 0 : index
    %c0_62 = arith.constant 0 : index
    %49 = vector.load %arg3[%c0_61, %c0_62] : memref<1x8xf32, #tpu.memory_space<vmem>>, vector<1x8xf32>
    %50 = vector.broadcast %49 : vector<1x8xf32> to vector<64x8xf32>
    %51 = arith.addf %48, %50 : vector<64x8xf32>
    %cst_63 = arith.constant 0.000000e+00 : f32
    %52 = vector.broadcast %cst_63 : f32 to vector<64x8xf32>
    %53 = arith.maximumf %51, %52 : vector<64x8xf32>
    %54 = vector.shape_cast %53 : vector<64x8xf32> to vector<8x8x8xf32>
    %cst_64 = arith.constant 0.000000e+00 : f32
    %55 = vector.broadcast %cst_64 : f32 to vector<1x10x8xf32>
    %c0_65 = arith.constant 0 : index
    %c0_66 = arith.constant 0 : index
    %c0_67 = arith.constant 0 : index
    %56 = vector.load %arg9[%c0_65, %c0_66, %c0_67] : memref<10x10x8xf32, #tpu.memory_space<vmem>>, vector<1x10x8xf32>
    tpu.vector_store %arg9[%c0_65, %c0_66, %c0_67], %55 {strides = array<i32>} : memref<10x10x8xf32, #tpu.memory_space<vmem>>, vector<1x10x8xf32>,
    %cst_68 = arith.constant 0.000000e+00 : f32
    %57 = vector.broadcast %cst_68 : f32 to vector<1x10x8xf32>
    %c9_69 = arith.constant 9 : index
    %c0_70 = arith.constant 0 : index
    %c0_71 = arith.constant 0 : index
    %58 = vector.load %arg9[%c9_69, %c0_70, %c0_71] : memref<10x10x8xf32, #tpu.memory_space<vmem>>, vector<1x10x8xf32>
    tpu.vector_store %arg9[%c9_69, %c0_70, %c0_71], %57 {strides = array<i32>} : memref<10x10x8xf32, #tpu.memory_space<vmem>>, vector<1x10x8xf32>,
    %cst_72 = arith.constant 0.000000e+00 : f32
    %59 = vector.broadcast %cst_72 : f32 to vector<8x1x8xf32>
    %c1_73 = arith.constant 1 : index
    %c0_74 = arith.constant 0 : index
    %c0_75 = arith.constant 0 : index
    %60 = vector.load %arg9[%c1_73, %c0_74, %c0_75] : memref<10x10x8xf32, #tpu.memory_space<vmem>>, vector<8x1x8xf32>
    tpu.vector_store %arg9[%c1_73, %c0_74, %c0_75], %59 {strides = array<i32>} : memref<10x10x8xf32, #tpu.memory_space<vmem>>, vector<8x1x8xf32>,
    %cst_76 = arith.constant 0.000000e+00 : f32
    %61 = vector.broadcast %cst_76 : f32 to vector<8x1x8xf32>
    %c1_77 = arith.constant 1 : index
    %c9_78 = arith.constant 9 : index
    %c0_79 = arith.constant 0 : index
    %62 = vector.load %arg9[%c1_77, %c9_78, %c0_79] : memref<10x10x8xf32, #tpu.memory_space<vmem>>, vector<8x1x8xf32>
    tpu.vector_store %arg9[%c1_77, %c9_78, %c0_79], %61 {strides = array<i32>} : memref<10x10x8xf32, #tpu.memory_space<vmem>>, vector<8x1x8xf32>,
    %c1_80 = arith.constant 1 : index
    %c1_81 = arith.constant 1 : index
    %c0_82 = arith.constant 0 : index
    %63 = vector.load %arg9[%c1_80, %c1_81, %c0_82] : memref<10x10x8xf32, #tpu.memory_space<vmem>>, vector<8x8x8xf32>
    tpu.vector_store %arg9[%c1_80, %c1_81, %c0_82], %54 {strides = array<i32>} : memref<10x10x8xf32, #tpu.memory_space<vmem>>, vector<8x8x8xf32>,
    %c0_83 = arith.constant 0 : index
    %c0_84 = arith.constant 0 : index
    %c0_85 = arith.constant 0 : index
    %64 = vector.load %arg9[%c0_83, %c0_84, %c0_85] : memref<10x10x8xf32, #tpu.memory_space<vmem>>, vector<8x8x8xf32>
    %65 = vector.shape_cast %64 : vector<8x8x8xf32> to vector<64x8xf32>
    %c0_86 = arith.constant 0 : index
    %c0_87 = arith.constant 0 : index
    %66 = vector.load %arg10[%c0_86, %c0_87] : memref<64x72xf32, #tpu.memory_space<vmem>>, vector<64x8xf32>
    tpu.vector_store %arg10[%c0_86, %c0_87], %65 {strides = array<i32>} : memref<64x72xf32, #tpu.memory_space<vmem>>, vector<64x8xf32>,
    %c0_88 = arith.constant 0 : index
    %c1_89 = arith.constant 1 : index
    %c0_90 = arith.constant 0 : index
    %67 = vector.load %arg9[%c0_88, %c1_89, %c0_90] : memref<10x10x8xf32, #tpu.memory_space<vmem>>, vector<8x8x8xf32>
    %68 = vector.shape_cast %67 : vector<8x8x8xf32> to vector<64x8xf32>
    %c0_91 = arith.constant 0 : index
    %c8_92 = arith.constant 8 : index
    %69 = vector.load %arg10[%c0_91, %c8_92] : memref<64x72xf32, #tpu.memory_space<vmem>>, vector<64x8xf32>
    tpu.vector_store %arg10[%c0_91, %c8_92], %68 {strides = array<i32>} : memref<64x72xf32, #tpu.memory_space<vmem>>, vector<64x8xf32>,
    %c0_93 = arith.constant 0 : index
    %c2_94 = arith.constant 2 : index
    %c0_95 = arith.constant 0 : index
    %70 = vector.load %arg9[%c0_93, %c2_94, %c0_95] : memref<10x10x8xf32, #tpu.memory_space<vmem>>, vector<8x8x8xf32>
    %71 = vector.shape_cast %70 : vector<8x8x8xf32> to vector<64x8xf32>
    %c0_96 = arith.constant 0 : index
    %c16_97 = arith.constant 16 : index
    %72 = vector.load %arg10[%c0_96, %c16_97] : memref<64x72xf32, #tpu.memory_space<vmem>>, vector<64x8xf32>
    tpu.vector_store %arg10[%c0_96, %c16_97], %71 {strides = array<i32>} : memref<64x72xf32, #tpu.memory_space<vmem>>, vector<64x8xf32>,
    %c1_98 = arith.constant 1 : index
    %c0_99 = arith.constant 0 : index
    %c0_100 = arith.constant 0 : index
    %73 = vector.load %arg9[%c1_98, %c0_99, %c0_100] : memref<10x10x8xf32, #tpu.memory_space<vmem>>, vector<8x8x8xf32>
    %74 = vector.shape_cast %73 : vector<8x8x8xf32> to vector<64x8xf32>
    %c0_101 = arith.constant 0 : index
    %c24_102 = arith.constant 24 : index
    %75 = vector.load %arg10[%c0_101, %c24_102] : memref<64x72xf32, #tpu.memory_space<vmem>>, vector<64x8xf32>
    tpu.vector_store %arg10[%c0_101, %c24_102], %74 {strides = array<i32>} : memref<64x72xf32, #tpu.memory_space<vmem>>, vector<64x8xf32>,
    %c1_103 = arith.constant 1 : index
    %c1_104 = arith.constant 1 : index
    %c0_105 = arith.constant 0 : index
    %76 = vector.load %arg9[%c1_103, %c1_104, %c0_105] : memref<10x10x8xf32, #tpu.memory_space<vmem>>, vector<8x8x8xf32>
    %77 = vector.shape_cast %76 : vector<8x8x8xf32> to vector<64x8xf32>
    %c0_106 = arith.constant 0 : index
    %c32_107 = arith.constant 32 : index
    %78 = vector.load %arg10[%c0_106, %c32_107] : memref<64x72xf32, #tpu.memory_space<vmem>>, vector<64x8xf32>
    tpu.vector_store %arg10[%c0_106, %c32_107], %77 {strides = array<i32>} : memref<64x72xf32, #tpu.memory_space<vmem>>, vector<64x8xf32>,
    %c1_108 = arith.constant 1 : index
    %c2_109 = arith.constant 2 : index
    %c0_110 = arith.constant 0 : index
    %79 = vector.load %arg9[%c1_108, %c2_109, %c0_110] : memref<10x10x8xf32, #tpu.memory_space<vmem>>, vector<8x8x8xf32>
    %80 = vector.shape_cast %79 : vector<8x8x8xf32> to vector<64x8xf32>
    %c0_111 = arith.constant 0 : index
    %c40 = arith.constant 40 : index
    %81 = vector.load %arg10[%c0_111, %c40] : memref<64x72xf32, #tpu.memory_space<vmem>>, vector<64x8xf32>
    tpu.vector_store %arg10[%c0_111, %c40], %80 {strides = array<i32>} : memref<64x72xf32, #tpu.memory_space<vmem>>, vector<64x8xf32>,
    %c2_112 = arith.constant 2 : index
    %c0_113 = arith.constant 0 : index
    %c0_114 = arith.constant 0 : index
    %82 = vector.load %arg9[%c2_112, %c0_113, %c0_114] : memref<10x10x8xf32, #tpu.memory_space<vmem>>, vector<8x8x8xf32>
    %83 = vector.shape_cast %82 : vector<8x8x8xf32> to vector<64x8xf32>
    %c0_115 = arith.constant 0 : index
    %c48 = arith.constant 48 : index
    %84 = vector.load %arg10[%c0_115, %c48] : memref<64x72xf32, #tpu.memory_space<vmem>>, vector<64x8xf32>
    tpu.vector_store %arg10[%c0_115, %c48], %83 {strides = array<i32>} : memref<64x72xf32, #tpu.memory_space<vmem>>, vector<64x8xf32>,
    %c2_116 = arith.constant 2 : index
    %c1_117 = arith.constant 1 : index
    %c0_118 = arith.constant 0 : index
    %85 = vector.load %arg9[%c2_116, %c1_117, %c0_118] : memref<10x10x8xf32, #tpu.memory_space<vmem>>, vector<8x8x8xf32>
    %86 = vector.shape_cast %85 : vector<8x8x8xf32> to vector<64x8xf32>
    %c0_119 = arith.constant 0 : index
    %c56 = arith.constant 56 : index
    %87 = vector.load %arg10[%c0_119, %c56] : memref<64x72xf32, #tpu.memory_space<vmem>>, vector<64x8xf32>
    tpu.vector_store %arg10[%c0_119, %c56], %86 {strides = array<i32>} : memref<64x72xf32, #tpu.memory_space<vmem>>, vector<64x8xf32>,
    %c2_120 = arith.constant 2 : index
    %c2_121 = arith.constant 2 : index
    %c0_122 = arith.constant 0 : index
    %88 = vector.load %arg9[%c2_120, %c2_121, %c0_122] : memref<10x10x8xf32, #tpu.memory_space<vmem>>, vector<8x8x8xf32>
    %89 = vector.shape_cast %88 : vector<8x8x8xf32> to vector<64x8xf32>
    %c0_123 = arith.constant 0 : index
    %c64 = arith.constant 64 : index
    %90 = vector.load %arg10[%c0_123, %c64] : memref<64x72xf32, #tpu.memory_space<vmem>>, vector<64x8xf32>
    tpu.vector_store %arg10[%c0_123, %c64], %89 {strides = array<i32>} : memref<64x72xf32, #tpu.memory_space<vmem>>, vector<64x8xf32>,
    %c0_124 = arith.constant 0 : index
    %c0_125 = arith.constant 0 : index
    %91 = vector.load %arg10[%c0_124, %c0_125] : memref<64x72xf32, #tpu.memory_space<vmem>>, vector<64x72xf32>
    %c0_126 = arith.constant 0 : index
    %c0_127 = arith.constant 0 : index
    %92 = vector.load %arg4[%c0_126, %c0_127] : memref<72x8xf32, #tpu.memory_space<vmem>>, vector<72x8xf32>
    %cst_128 = arith.constant dense<0.000000e+00> : vector<64x8xf32>
    %93 = tpu.matmul %91, %92, %cst_128 {dimension_numbers = #tpu.dot_dimension_numbers<[1], [0], [0], [1], [0, 0, 1, 1], [], []>} : vector<64x72xf32>, vector<72x8xf32>, vector<64x8xf32> -> vector<64x8xf32>
    %c0_129 = arith.constant 0 : index
    %c0_130 = arith.constant 0 : index
    %94 = vector.load %arg5[%c0_129, %c0_130] : memref<1x8xf32, #tpu.memory_space<vmem>>, vector<1x8xf32>
    %95 = vector.broadcast %94 : vector<1x8xf32> to vector<64x8xf32>
    %96 = arith.addf %93, %95 : vector<64x8xf32>
    %cst_131 = arith.constant 0.000000e+00 : f32
    %97 = vector.broadcast %cst_131 : f32 to vector<64x8xf32>
    %98 = arith.maximumf %96, %97 : vector<64x8xf32>
    %c0_132 = arith.constant 0 : index
    %c0_133 = arith.constant 0 : index
    %c0_134 = arith.constant 0 : index
    %99 = vector.load %arg6[%c0_132, %c0_133, %c0_134] : memref<1x64x8xf32, #tpu.memory_space<vmem>>, vector<1x64x8xf32>
    %100 = vector.shape_cast %99 : vector<1x64x8xf32> to vector<64x8xf32>
    %101 = vector.shape_cast %98 : vector<64x8xf32> to vector<1x64x8xf32>
    tpu.vector_store %arg6[%c0_132, %c0_133, %c0_134], %101 {strides = array<i32>} : memref<1x64x8xf32, #tpu.memory_space<vmem>>, vector<1x64x8xf32>,
    return
  }
  func.func @transform_0(%arg0: i32) -> (i32, i32, i32, i32, i32) {
    %c0_i32 = arith.constant 0 : i32
    %c0_i32_0 = arith.constant 0 : i32
    %c0_i32_1 = arith.constant 0 : i32
    %c0_i32_2 = arith.constant 0 : i32
    %c0_i32_3 = arith.constant 0 : i32
    return %arg0, %c0_i32, %c0_i32_0, %c0_i32_1, %c0_i32_2 : i32, i32, i32, i32, i32
  }
  func.func @transform_1(%arg0: i32) -> (i32, i32) {
    %c0_i32 = arith.constant 0 : i32
    %c0_i32_0 = arith.constant 0 : i32
    %c0_i32_1 = arith.constant 0 : i32
    return %c0_i32, %c0_i32_0 : i32, i32
  }
  func.func @transform_2(%arg0: i32) -> (i32, i32) {
    %c0_i32 = arith.constant 0 : i32
    %c0_i32_0 = arith.constant 0 : i32
    %c0_i32_1 = arith.constant 0 : i32
    return %c0_i32, %c0_i32_0 : i32, i32
  }
  func.func @transform_3(%arg0: i32) -> (i32, i32) {
    %c0_i32 = arith.constant 0 : i32
    %c0_i32_0 = arith.constant 0 : i32
    %c0_i32_1 = arith.constant 0 : i32
    return %c0_i32, %c0_i32_0 : i32, i32
  }
  func.func @transform_4(%arg0: i32) -> (i32, i32) {
    %c0_i32 = arith.constant 0 : i32
    %c0_i32_0 = arith.constant 0 : i32
    %c0_i32_1 = arith.constant 0 : i32
    return %c0_i32, %c0_i32_0 : i32, i32
  }
  func.func @transform_5(%arg0: i32) -> (i32, i32, i32) {
    %c0_i32 = arith.constant 0 : i32
    %c0_i32_0 = arith.constant 0 : i32
    %c0_i32_1 = arith.constant 0 : i32
    return %arg0, %c0_i32, %c0_i32_0 : i32, i32, i32
  }
}

</mosaic_0001>

<llo_original>
// kernel: downsample_pallas.1
$region0: #{downsample_pallas.1}
  #allocation0 [shape = 'u32[]', space=smem, size = 0x4, offset = 0x4, fixed_abs, tag = 'smem constant byte address 0x4 - core index']
  #allocation1 [shape = 'u32[144,128]{1,0:T(1,128)}', space=vmem, size = 0x12000, scoped, tag = 'internal scratch']
  #allocation2 [shape = 'f32[10,10,4]{2,1,0:T(8,128)}', space=vmem, size = 0x14000, scoped, tag = 'scratch operand']
  #allocation3 [shape = 'f32[64,36]{1,0:T(8,128)}', space=vmem, size = 0x8000, scoped, tag = 'scratch operand']
  #allocation4 [shape = 'f32[10,10,8]{2,1,0:T(8,128)}', space=vmem, size = 0x14000, scoped, tag = 'scratch operand']
  #allocation5 [shape = 'f32[64,72]{1,0:T(8,128)}', space=vmem, size = 0x8000, scoped, tag = 'scratch operand']
  %s0 = inlined_call_operand.vmem [shape: f32[2,8,2,8,8], index: 0, kind: input, shape index: {}]
  %s1 = inlined_call_operand.vmem [shape: f32[36,8], index: 1, kind: input, shape index: {}]
  %s2 = inlined_call_operand.vmem [shape: f32[1,8], index: 2, kind: input, shape index: {}]
  %s3 = inlined_call_operand.vmem [shape: f32[72,8], index: 3, kind: input, shape index: {}]
  %s4 = inlined_call_operand.vmem [shape: f32[1,8], index: 4, kind: input, shape index: {}]
  %s5 = inlined_call_operand.vmem [shape: f32[2,64,8], index: 5, kind: output, shape index: {}]
  %s6 = sld [smem:[#allocation0]]
  $region53: #{downsample_pallas.1} parent=0
    _
  %s8 = ssub.s32 1, %s6
  %s9 = scalar_select 0, %s8, %s6
  loop: start=0, step=1, limit=4
  $region2: #{downsample_pallas.1} parent=0 // loop_pre_header
    _
  $region3: #{downsample_pallas.1} parent=0 // loop_header
    %s11 = sphi 0, %s15
    %p12 = scmp.ge.s32.totalorder %s11, 4
    %s21 = sphi 0, %s23
    %s24 = sphi 0, %s21
    %s25 = sphi 0, %s24
    %s41 = sphi 0, %s25
    %s45 = sphi 0, %s45
    %s47 = sphi 0, %s45
    %s48 = sphi 0, %s47
    %s62 = sphi 0, %s48
    %s66 = sphi 0, %s66
    %s68 = sphi 0, %s66
    %s69 = sphi 0, %s68
    %s83 = sphi 0, %s69
    %s87 = sphi 0, %s87
    %s89 = sphi 0, %s87
    %s90 = sphi 0, %s89
    %s104 = sphi 0, %s90
    %s108 = sphi 0, %s108
    %s110 = sphi 0, %s108
    %s111 = sphi 0, %s110
    %s125 = sphi 0, %s111
    %s131 = sphi 0, %s133
    %s134 = sphi 0, %s131
    %s135 = sphi 0, %s134
    %s151 = sphi 0, %s135
  $region4: #{downsample_pallas.1} parent=0 // loop_header_branch
    %14 = sbr.rel (%p12) target = $region8
  $region5: #{downsample_pallas.1} parent=0 // loop_body
    %s16 = ssub.s32 %s11, 1
    %s17 = ssub.s32 %s11, 2
    %s18 = sadd.s32 %s11, 1
    %s19 = ssub.s32 %s11, %s18
    %p20 = scmp.eq.s32.totalorder %s19, 0
    %s22 = sadd.s32 %s21, 1
    %s23 = scalar_select %p20, %s21, %s22
    %p26 = pneg %p20
    %p27 = scmp.eq.s32.totalorder %s11, 1
    %p28 = por %p26, %p27
    %p29 = scmp.ne.s32.totalorder %s21, %s24
    %p30 = scmp.eq.s32.totalorder %s11, 0
    %p31 = por %p29, %p30
    %p32 = scmp.ne.s32.totalorder %s21, %s24
    %p33 = scmp.eq.s32.totalorder %s16, 1
    %p34 = por %p32, %p33
    %p35 = scmp.ne.s32.totalorder %s24, %s25
    %p36 = scmp.eq.s32.totalorder %s16, 0
    %p37 = por %p35, %p36
    %p38 = scmp.ne.s32.totalorder %s24, %s25
    %p39 = scmp.eq.s32.totalorder %s17, 1
    %p40 = por %p38, %p39
    %p42 = scmp.ne.s32.totalorder %s25, %s41
    %p43 = scmp.eq.s32.totalorder %s17, 0
    %p44 = por %p42, %p43
    %s46 = sadd.s32 %s45, 1
    %p49 = scmp.eq.s32.totalorder %s11, 1
    %p50 = scmp.ne.s32.totalorder %s45, %s47
    %p51 = scmp.eq.s32.totalorder %s11, 0
    %p52 = por %p50, %p51
    %p53 = scmp.ne.s32.totalorder %s45, %s47
    %p54 = scmp.eq.s32.totalorder %s16, 1
    %p55 = por %p53, %p54
    %p56 = scmp.ne.s32.totalorder %s47, %s48
    %p57 = scmp.eq.s32.totalorder %s16, 0
    %p58 = por %p56, %p57
    %p59 = scmp.ne.s32.totalorder %s47, %s48
    %p60 = scmp.eq.s32.totalorder %s17, 1
    %p61 = por %p59, %p60
    %p63 = scmp.ne.s32.totalorder %s48, %s62
    %p64 = scmp.eq.s32.totalorder %s17, 0
    %p65 = por %p63, %p64
    %s67 = sadd.s32 %s66, 1
    %p70 = scmp.eq.s32.totalorder %s11, 1
    %p71 = scmp.ne.s32.totalorder %s66, %s68
    %p72 = scmp.eq.s32.totalorder %s11, 0
    %p73 = por %p71, %p72
    %p74 = scmp.ne.s32.totalorder %s66, %s68
    %p75 = scmp.eq.s32.totalorder %s16, 1
    %p76 = por %p74, %p75
    %p77 = scmp.ne.s32.totalorder %s68, %s69
    %p78 = scmp.eq.s32.totalorder %s16, 0
    %p79 = por %p77, %p78
    %p80 = scmp.ne.s32.totalorder %s68, %s69
    %p81 = scmp.eq.s32.totalorder %s17, 1
    %p82 = por %p80, %p81
    %p84 = scmp.ne.s32.totalorder %s69, %s83
    %p85 = scmp.eq.s32.totalorder %s17, 0
    %p86 = por %p84, %p85
    %s88 = sadd.s32 %s87, 1
    %p91 = scmp.eq.s32.totalorder %s11, 1
    %p92 = scmp.ne.s32.totalorder %s87, %s89
    %p93 = scmp.eq.s32.totalorder %s11, 0
    %p94 = por %p92, %p93
    %p95 = scmp.ne.s32.totalorder %s87, %s89
    %p96 = scmp.eq.s32.totalorder %s16, 1
    %p97 = por %p95, %p96
    %p98 = scmp.ne.s32.totalorder %s89, %s90
    %p99 = scmp.eq.s32.totalorder %s16, 0
    %p100 = por %p98, %p99
    %p101 = scmp.ne.s32.totalorder %s89, %s90
    %p102 = scmp.eq.s32.totalorder %s17, 1
    %p103 = por %p101, %p102
    %p105 = scmp.ne.s32.totalorder %s90, %s104
    %p106 = scmp.eq.s32.totalorder %s17, 0
    %p107 = por %p105, %p106
    %s109 = sadd.s32 %s108, 1
    %p112 = scmp.eq.s32.totalorder %s11, 1
    %p113 = scmp.ne.s32.totalorder %s108, %s110
    %p114 = scmp.eq.s32.totalorder %s11, 0
    %p115 = por %p113, %p114
    %p116 = scmp.ne.s32.totalorder %s108, %s110
    %p117 = scmp.eq.s32.totalorder %s16, 1
    %p118 = por %p116, %p117
    %p119 = scmp.ne.s32.totalorder %s110, %s111
    %p120 = scmp.eq.s32.totalorder %s16, 0
    %p121 = por %p119, %p120
    %p122 = scmp.ne.s32.totalorder %s110, %s111
    %p123 = scmp.eq.s32.totalorder %s17, 1
    %p124 = por %p122, %p123
    %p126 = scmp.ne.s32.totalorder %s111, %s125
    %p127 = scmp.eq.s32.totalorder %s17, 0
    %p128 = por %p126, %p127
    %s129 = ssub.s32 %s11, %s18
    %p130 = scmp.eq.s32.totalorder %s129, 0
    %s132 = sadd.s32 %s131, 1
    %s133 = scalar_select %p130, %s131, %s132
    %p136 = pneg %p130
    %p137 = scmp.eq.s32.totalorder %s11, 1
    %p138 = por %p136, %p137
    %p139 = scmp.ne.s32.totalorder %s131, %s134
    %p140 = scmp.eq.s32.totalorder %s11, 0
    %p141 = por %p139, %p140
    %p142 = scmp.ne.s32.totalorder %s131, %s134
    %p143 = scmp.eq.s32.totalorder %s16, 1
    %p144 = por %p142, %p143
    %p145 = scmp.ne.s32.totalorder %s134, %s135
    %p146 = scmp.eq.s32.totalorder %s16, 0
    %p147 = por %p145, %p146
    %p148 = scmp.ne.s32.totalorder %s134, %s135
    %p149 = scmp.eq.s32.totalorder %s17, 1
    %p150 = por %p148, %p149
    %p152 = scmp.ne.s32.totalorder %s135, %s151
    %p153 = scmp.eq.s32.totalorder %s17, 0
    %p154 = por %p152, %p153
    %p155 = scmp.le.s32.totalorder 1, %s11
    %p156 = scmp.lt.s32.totalorder %s11, 3
    %p157 = pnand %p155, %p156
    %p158 = pneg %p157
    // Predicated region
    $region9: #{downsample_pallas.1} parent=5 // pred_check
      _
    $region10: #{downsample_pallas.1} parent=5 // pred_check_branch
      %160 = sbr.rel (%p157) target = $region12
    $region11: #{downsample_pallas.1} parent=5 // pred_region
      %s161 = ssub.s32 %s11, 1
      // Predicated region
      $region13: #{downsample_pallas.1} parent=11 // pred_check
        %p162 = pneg %p58
      $region14: #{downsample_pallas.1} parent=11 // pred_check_branch
        %164 = sbr.rel (%p162) target = $region16
      $region15: #{downsample_pallas.1} parent=11 // pred_region
        _
      $region16: #{downsample_pallas.1} parent=11 // pred_fallthru
        _
      // Predicated region
      $region17: #{downsample_pallas.1} parent=11 // pred_check
        %p165 = pneg %p79
      $region18: #{downsample_pallas.1} parent=11 // pred_check_branch
        %167 = sbr.rel (%p165) target = $region20
      $region19: #{downsample_pallas.1} parent=11 // pred_region
        _
      $region20: #{downsample_pallas.1} parent=11 // pred_fallthru
        _
      // Predicated region
      $region21: #{downsample_pallas.1} parent=11 // pred_check
        %p168 = pneg %p100
      $region22: #{downsample_pallas.1} parent=11 // pred_check_branch
        %170 = sbr.rel (%p168) target = $region24
      $region23: #{downsample_pallas.1} parent=11 // pred_region
        _
      $region24: #{downsample_pallas.1} parent=11 // pred_fallthru
        _
      // Predicated region
      $region25: #{downsample_pallas.1} parent=11 // pred_check
        %p171 = pneg %p121
      $region26: #{downsample_pallas.1} parent=11 // pred_check_branch
        %173 = sbr.rel (%p171) target = $region28
      $region27: #{downsample_pallas.1} parent=11 // pred_region
        _
      $region28: #{downsample_pallas.1} parent=11 // pred_fallthru
        _
    $region12: #{downsample_pallas.1} parent=5 // pred_fallthru
      _
    %p174 = scmp.lt.s32.totalorder %s11, 2
    // Predicated region
    $region29: #{downsample_pallas.1} parent=5 // pred_check
      %p175 = pneg %p174
    $region30: #{downsample_pallas.1} parent=5 // pred_check_branch
      %177 = sbr.rel (%p175) target = $region32
    $region31: #{downsample_pallas.1} parent=5 // pred_region
      // Predicated region
      $region33: #{downsample_pallas.1} parent=31 // pred_check
        %p178 = pneg %p31
      $region34: #{downsample_pallas.1} parent=31 // pred_check_branch
        %180 = sbr.rel (%p178) target = $region36
      $region35: #{downsample_pallas.1} parent=31 // pred_region
        %p181 = scmp.lt.s32.totalorder %s11, 1
        %s182 = scalar_select %p181, %s11, 1
        %s183 = smul.addr %s182, 16
        %s184 = smul.addr %s183, 8
        %s185 = scalar_lea.vmem %s0, %s184
      $region36: #{downsample_pallas.1} parent=31 // pred_fallthru
        _
    $region32: #{downsample_pallas.1} parent=5 // pred_fallthru
      _
    %p186 = scmp.le.s32.totalorder 1, %s11
    %p187 = scmp.lt.s32.totalorder %s11, 3
    %p188 = pnand %p186, %p187
    %p189 = pneg %p188
    // Predicated region
    $region37: #{downsample_pallas.1} parent=5 // pred_check
      _
    $region38: #{downsample_pallas.1} parent=5 // pred_check_branch
      %191 = sbr.rel (%p188) target = $region40
    $region39: #{downsample_pallas.1} parent=5 // pred_region
      %s192 = ssub.s32 %s11, 1
      %p193 = scmp.lt.s32.totalorder %s16, 1
      %s194 = scalar_select %p193, %s16, 1
      %s195 = smul.addr %s194, 16
      %s196 = smul.addr %s195, 8
      %s197 = scalar_lea.vmem %s0, %s196
      %p198 = pneg %p37
      %p199 = pneg %p34
      %p200 = pneg %p58
      %p201 = pneg %p55
      %p202 = pneg %p79
      %p203 = pneg %p76
      %p204 = pneg %p100
      %p205 = pneg %p97
      %p206 = pneg %p121
      %p207 = pneg %p118
      %p208 = pneg %p147
      %p209 = pneg %p144
      %p210 = scmp.lt.s32.totalorder %s16, 1
      %s211 = scalar_select %p210, %s16, 1
      %s212 = smul.addr %s211, 8
      %s213 = smul.addr %s212, 8
      %s214 = scalar_lea.vmem %s5, %s213
      %p215 = scmp.lt.s32.totalorder %s16, 1
      %s216 = scalar_select %p215, %s16, 1
      %s217 = smul.addr %s216, 16
      %s218 = smul.addr %s217, 8
      %s219 = scalar_lea.vmem %s0, %s218
      %p220 = scmp.lt.s32.totalorder %s16, 1
      %s221 = scalar_select %p220, %s16, 1
      %s222 = smul.addr %s221, 8
      %s223 = smul.addr %s222, 8
      %s224 = scalar_lea.vmem %s5, %s223
      %v225 = vld [vmem:[%s219] sm:$0xff]
      %v226 = vld [vmem:[%s219 + $0x8] sm:$0xff]
      %v227 = vld [vmem:[%s219 + $0x10] sm:$0xff]
      %v228 = vld [vmem:[%s219 + $0x18] sm:$0xff]
      %v229 = vld [vmem:[%s219 + $0x20] sm:$0xff]
      %v230 = vld [vmem:[%s219 + $0x28] sm:$0xff]
      %v231 = vld [vmem:[%s219 + $0x30] sm:$0xff]
      %v232 = vld [vmem:[%s219 + $0x38] sm:$0xff]
      %v233 = vld [vmem:[%s219 + $0x40] sm:$0xff]
      %v234 = vld [vmem:[%s219 + $0x48] sm:$0xff]
      %v235 = vld [vmem:[%s219 + $0x50] sm:$0xff]
      %v236 = vld [vmem:[%s219 + $0x58] sm:$0xff]
      %v237 = vld [vmem:[%s219 + $0x60] sm:$0xff]
      %v238 = vld [vmem:[%s219 + $0x68] sm:$0xff]
      %v239 = vld [vmem:[%s219 + $0x70] sm:$0xff]
      %v240 = vld [vmem:[%s219 + $0x78] sm:$0xff]
      %v241 = vmax.f32 %v225, %v226
      %v242 = vmax.f32 %v227, %v228
      %v243 = vmax.f32 %v229, %v230
      %v244 = vmax.f32 %v231, %v232
      %v245 = vmax.f32 %v233, %v234
      %v246 = vmax.f32 %v235, %v236
      %v247 = vmax.f32 %v237, %v238
      %v248 = vmax.f32 %v239, %v240
      %257 = vrot.lane.b32.xlu0 %v241, 124
      %v258 = vpop.permute.xlu0 %257
      %259 = vrot.lane.b32.xlu0 %v242, 124
      %v260 = vpop.permute.xlu0 %259
      %261 = vrot.lane.b32.xlu0 %v243, 124
      %v262 = vpop.permute.xlu0 %261
      %263 = vrot.lane.b32.xlu0 %v244, 124
      %v264 = vpop.permute.xlu0 %263
      %265 = vrot.lane.b32.xlu0 %v245, 124
      %v266 = vpop.permute.xlu0 %265
      %267 = vrot.lane.b32.xlu0 %v246, 124
      %v268 = vpop.permute.xlu0 %267
      %269 = vrot.lane.b32.xlu0 %v247, 124
      %v270 = vpop.permute.xlu0 %269
      %271 = vrot.lane.b32.xlu0 %v248, 124
      %v272 = vpop.permute.xlu0 %271
      %v281 = vmax.f32 %v241, %v258
      %v282 = vmax.f32 %v242, %v260
      %v283 = vmax.f32 %v243, %v262
      %v284 = vmax.f32 %v244, %v264
      %v285 = vmax.f32 %v245, %v266
      %v286 = vmax.f32 %v246, %v268
      %v287 = vmax.f32 %v247, %v270
      %v288 = vmax.f32 %v248, %v272
      %vm289 = vcmask 31744
      %290 = vst.msk [vmem:[#allocation2] sm:$0xff] %vm289, 0.0
      %vm291 = vcmask 25600
      %292 = vst.msk [vmem:[#allocation2 + $0x8] sm:$0x3] %vm291, 0.0
      %s293 = scalar_lea.vmem [#allocation2], 144
      %294 = vst.msk [vmem:[%s293] sm:$0xff] %vm289, 0.0
      %295 = vst.msk [vmem:[%s293 + $0x8] sm:$0x3] %vm291, 0.0
      %s296 = scalar_lea.vmem [#allocation2], 16
      %vm297 = vcmask 24576
      %298 = vst.msk [vmem:[%s296] sm:$0x1] %vm297, 0.0
      %299 = vst.msk [vmem:[%s296 + $0x10] sm:$0x1] %vm297, 0.0
      %300 = vst.msk [vmem:[%s296 + $0x20] sm:$0x1] %vm297, 0.0
      %301 = vst.msk [vmem:[%s296 + $0x30] sm:$0x1] %vm297, 0.0
      %302 = vst.msk [vmem:[%s296 + $0x40] sm:$0x1] %vm297, 0.0
      %303 = vst.msk [vmem:[%s296 + $0x50] sm:$0x1] %vm297, 0.0
      %304 = vst.msk [vmem:[%s296 + $0x60] sm:$0x1] %vm297, 0.0
      %305 = vst.msk [vmem:[%s296 + $0x70] sm:$0x1] %vm297, 0.0
      %306 = vst.msk [vmem:[%s296 + $0x9] sm:$0x1] %vm297, 0.0
      %307 = vst.msk [vmem:[%s296 + $0x19] sm:$0x1] %vm297, 0.0
      %308 = vst.msk [vmem:[%s296 + $0x29] sm:$0x1] %vm297, 0.0
      %309 = vst.msk [vmem:[%s296 + $0x39] sm:$0x1] %vm297, 0.0
      %310 = vst.msk [vmem:[%s296 + $0x49] sm:$0x1] %vm297, 0.0
      %311 = vst.msk [vmem:[%s296 + $0x59] sm:$0x1] %vm297, 0.0
      %312 = vst.msk [vmem:[%s296 + $0x69] sm:$0x1] %vm297, 0.0
      %313 = vst.msk [vmem:[%s296 + $0x79] sm:$0x1] %vm297, 0.0
      %314 = vst.msk [vmem:[%s296 + $0x1] sm:$0xff] %vm289, %v281
      %315 = vst.msk [vmem:[%s296 + $0x11] sm:$0xff] %vm289, %v282
      %316 = vst.msk [vmem:[%s296 + $0x21] sm:$0xff] %vm289, %v283
      %317 = vst.msk [vmem:[%s296 + $0x31] sm:$0xff] %vm289, %v284
      %318 = vst.msk [vmem:[%s296 + $0x41] sm:$0xff] %vm289, %v285
      %319 = vst.msk [vmem:[%s296 + $0x51] sm:$0xff] %vm289, %v286
      %320 = vst.msk [vmem:[%s296 + $0x61] sm:$0xff] %vm289, %v287
      %321 = vst.msk [vmem:[%s296 + $0x71] sm:$0xff] %vm289, %v288
      %v322 = vld [vmem:[#allocation2] sm:$0xff]
      %v323 = vld [vmem:[#allocation2 + $0x10] sm:$0xff]
      %v324 = vld [vmem:[#allocation2 + $0x20] sm:$0xff]
      %v325 = vld [vmem:[#allocation2 + $0x30] sm:$0xff]
      %v326 = vld [vmem:[#allocation2 + $0x40] sm:$0xff]
      %v327 = vld [vmem:[#allocation2 + $0x50] sm:$0xff]
      %v328 = vld [vmem:[#allocation2 + $0x60] sm:$0xff]
      %v329 = vld [vmem:[#allocation2 + $0x70] sm:$0xff]
      %330 = vst.msk [vmem:[#allocation3] sm:$0xff] %vm289, %v322
      %331 = vst.msk [vmem:[#allocation3 + $0x8] sm:$0xff] %vm289, %v323
      %332 = vst.msk [vmem:[#allocation3 + $0x10] sm:$0xff] %vm289, %v324
      %333 = vst.msk [vmem:[#allocation3 + $0x18] sm:$0xff] %vm289, %v325
      %334 = vst.msk [vmem:[#allocation3 + $0x20] sm:$0xff] %vm289, %v326
      %335 = vst.msk [vmem:[#allocation3 + $0x28] sm:$0xff] %vm289, %v327
      %336 = vst.msk [vmem:[#allocation3 + $0x30] sm:$0xff] %vm289, %v328
      %337 = vst.msk [vmem:[#allocation3 + $0x38] sm:$0xff] %vm289, %v329
      %v338 = vld [vmem:[#allocation2 + $0x1] sm:$0xff]
      %v339 = vld [vmem:[#allocation2 + $0x11] sm:$0xff]
      %v340 = vld [vmem:[#allocation2 + $0x21] sm:$0xff]
      %v341 = vld [vmem:[#allocation2 + $0x31] sm:$0xff]
      %v342 = vld [vmem:[#allocation2 + $0x41] sm:$0xff]
      %v343 = vld [vmem:[#allocation2 + $0x51] sm:$0xff]
      %v344 = vld [vmem:[#allocation2 + $0x61] sm:$0xff]
      %v345 = vld [vmem:[#allocation2 + $0x71] sm:$0xff]
      %354 = vrot.lane.b32.xlu0 %v338, 4
      %v355 = vpop.permute.xlu0 %354
      %356 = vrot.lane.b32.xlu0 %v339, 4
      %v357 = vpop.permute.xlu0 %356
      %358 = vrot.lane.b32.xlu0 %v340, 4
      %v359 = vpop.permute.xlu0 %358
      %360 = vrot.lane.b32.xlu0 %v341, 4
      %v361 = vpop.permute.xlu0 %360
      %362 = vrot.lane.b32.xlu0 %v342, 4
      %v363 = vpop.permute.xlu0 %362
      %364 = vrot.lane.b32.xlu0 %v343, 4
      %v365 = vpop.permute.xlu0 %364
      %366 = vrot.lane.b32.xlu0 %v344, 4
      %v367 = vpop.permute.xlu0 %366
      %368 = vrot.lane.b32.xlu0 %v345, 4
      %v369 = vpop.permute.xlu0 %368
      %vm378 = vcmask 64544
      %379 = vst.msk [vmem:[#allocation3] sm:$0xff] %vm378, %v355
      %380 = vst.msk [vmem:[#allocation3 + $0x8] sm:$0xff] %vm378, %v357
      %381 = vst.msk [vmem:[#allocation3 + $0x10] sm:$0xff] %vm378, %v359
      %382 = vst.msk [vmem:[#allocation3 + $0x18] sm:$0xff] %vm378, %v361
      %383 = vst.msk [vmem:[#allocation3 + $0x20] sm:$0xff] %vm378, %v363
      %384 = vst.msk [vmem:[#allocation3 + $0x28] sm:$0xff] %vm378, %v365
      %385 = vst.msk [vmem:[#allocation3 + $0x30] sm:$0xff] %vm378, %v367
      %386 = vst.msk [vmem:[#allocation3 + $0x38] sm:$0xff] %vm378, %v369
      %v387 = vld [vmem:[#allocation2 + $0x2] sm:$0xff]
      %v388 = vld [vmem:[#allocation2 + $0x12] sm:$0xff]
      %v389 = vld [vmem:[#allocation2 + $0x22] sm:$0xff]
      %v390 = vld [vmem:[#allocation2 + $0x32] sm:$0xff]
      %v391 = vld [vmem:[#allocation2 + $0x42] sm:$0xff]
      %v392 = vld [vmem:[#allocation2 + $0x52] sm:$0xff]
      %v393 = vld [vmem:[#allocation2 + $0x62] sm:$0xff]
      %v394 = vld [vmem:[#allocation2 + $0x72] sm:$0xff]
      %403 = vrot.lane.b32.xlu0 %v387, 8
      %v404 = vpop.permute.xlu0 %403
      %405 = vrot.lane.b32.xlu0 %v388, 8
      %v406 = vpop.permute.xlu0 %405
      %407 = vrot.lane.b32.xlu0 %v389, 8
      %v408 = vpop.permute.xlu0 %407
      %409 = vrot.lane.b32.xlu0 %v390, 8
      %v410 = vpop.permute.xlu0 %409
      %411 = vrot.lane.b32.xlu0 %v391, 8
      %v412 = vpop.permute.xlu0 %411
      %413 = vrot.lane.b32.xlu0 %v392, 8
      %v414 = vpop.permute.xlu0 %413
      %415 = vrot.lane.b32.xlu0 %v393, 8
      %v416 = vpop.permute.xlu0 %415
      %417 = vrot.lane.b32.xlu0 %v394, 8
      %v418 = vpop.permute.xlu0 %417
      %vm427 = vcmask 97344
      %428 = vst.msk [vmem:[#allocation3] sm:$0xff] %vm427, %v404
      %429 = vst.msk [vmem:[#allocation3 + $0x8] sm:$0xff] %vm427, %v406
      %430 = vst.msk [vmem:[#allocation3 + $0x10] sm:$0xff] %vm427, %v408
      %431 = vst.msk [vmem:[#allocation3 + $0x18] sm:$0xff] %vm427, %v410
      %432 = vst.msk [vmem:[#allocation3 + $0x20] sm:$0xff] %vm427, %v412
      %433 = vst.msk [vmem:[#allocation3 + $0x28] sm:$0xff] %vm427, %v414
      %434 = vst.msk [vmem:[#allocation3 + $0x30] sm:$0xff] %vm427, %v416
      %435 = vst.msk [vmem:[#allocation3 + $0x38] sm:$0xff] %vm427, %v418
      %v436 = vld [vmem:[%s296] sm:$0xff]
      %v437 = vld [vmem:[%s296 + $0x10] sm:$0xff]
      %v438 = vld [vmem:[%s296 + $0x20] sm:$0xff]
      %v439 = vld [vmem:[%s296 + $0x30] sm:$0xff]
      %v440 = vld [vmem:[%s296 + $0x40] sm:$0xff]
      %v441 = vld [vmem:[%s296 + $0x50] sm:$0xff]
      %v442 = vld [vmem:[%s296 + $0x60] sm:$0xff]
      %v443 = vld [vmem:[%s296 + $0x70] sm:$0xff]
      %452 = vrot.lane.b32.xlu0 %v436, 12
      %v453 = vpop.permute.xlu0 %452
      %454 = vrot.lane.b32.xlu0 %v437, 12
      %v455 = vpop.permute.xlu0 %454
      %456 = vrot.lane.b32.xlu0 %v438, 12
      %v457 = vpop.permute.xlu0 %456
      %458 = vrot.lane.b32.xlu0 %v439, 12
      %v459 = vpop.permute.xlu0 %458
      %460 = vrot.lane.b32.xlu0 %v440, 12
      %v461 = vpop.permute.xlu0 %460
      %462 = vrot.lane.b32.xlu0 %v441, 12
      %v463 = vpop.permute.xlu0 %462
      %464 = vrot.lane.b32.xlu0 %v442, 12
      %v465 = vpop.permute.xlu0 %464
      %466 = vrot.lane.b32.xlu0 %v443, 12
      %v467 = vpop.permute.xlu0 %466
      %vm476 = vcmask 130144
      %477 = vst.msk [vmem:[#allocation3] sm:$0xff] %vm476, %v453
      %478 = vst.msk [vmem:[#allocation3 + $0x8] sm:$0xff] %vm476, %v455
      %479 = vst.msk [vmem:[#allocation3 + $0x10] sm:$0xff] %vm476, %v457
      %480 = vst.msk [vmem:[#allocation3 + $0x18] sm:$0xff] %vm476, %v459
      %481 = vst.msk [vmem:[#allocation3 + $0x20] sm:$0xff] %vm476, %v461
      %482 = vst.msk [vmem:[#allocation3 + $0x28] sm:$0xff] %vm476, %v463
      %483 = vst.msk [vmem:[#allocation3 + $0x30] sm:$0xff] %vm476, %v465
      %484 = vst.msk [vmem:[#allocation3 + $0x38] sm:$0xff] %vm476, %v467
      %v485 = vld [vmem:[%s296 + $0x1] sm:$0xff]
      %v486 = vld [vmem:[%s296 + $0x11] sm:$0xff]
      %v487 = vld [vmem:[%s296 + $0x21] sm:$0xff]
      %v488 = vld [vmem:[%s296 + $0x31] sm:$0xff]
      %v489 = vld [vmem:[%s296 + $0x41] sm:$0xff]
      %v490 = vld [vmem:[%s296 + $0x51] sm:$0xff]
      %v491 = vld [vmem:[%s296 + $0x61] sm:$0xff]
      %v492 = vld [vmem:[%s296 + $0x71] sm:$0xff]
      %501 = vrot.lane.b32.xlu0 %v485, 16
      %v502 = vpop.permute.xlu0 %501
      %503 = vrot.lane.b32.xlu0 %v486, 16
      %v504 = vpop.permute.xlu0 %503
      %505 = vrot.lane.b32.xlu0 %v487, 16
      %v506 = vpop.permute.xlu0 %505
      %507 = vrot.lane.b32.xlu0 %v488, 16
      %v508 = vpop.permute.xlu0 %507
      %509 = vrot.lane.b32.xlu0 %v489, 16
      %v510 = vpop.permute.xlu0 %509
      %511 = vrot.lane.b32.xlu0 %v490, 16
      %v512 = vpop.permute.xlu0 %511
      %513 = vrot.lane.b32.xlu0 %v491, 16
      %v514 = vpop.permute.xlu0 %513
      %515 = vrot.lane.b32.xlu0 %v492, 16
      %v516 = vpop.permute.xlu0 %515
      %vm525 = vcmask 162944
      %526 = vst.msk [vmem:[#allocation3] sm:$0xff] %vm525, %v502
      %527 = vst.msk [vmem:[#allocation3 + $0x8] sm:$0xff] %vm525, %v504
      %528 = vst.msk [vmem:[#allocation3 + $0x10] sm:$0xff] %vm525, %v506
      %529 = vst.msk [vmem:[#allocation3 + $0x18] sm:$0xff] %vm525, %v508
      %530 = vst.msk [vmem:[#allocation3 + $0x20] sm:$0xff] %vm525, %v510
      %531 = vst.msk [vmem:[#allocation3 + $0x28] sm:$0xff] %vm525, %v512
      %532 = vst.msk [vmem:[#allocation3 + $0x30] sm:$0xff] %vm525, %v514
      %533 = vst.msk [vmem:[#allocation3 + $0x38] sm:$0xff] %vm525, %v516
      %v534 = vld [vmem:[%s296 + $0x2] sm:$0xff]
      %v535 = vld [vmem:[%s296 + $0x12] sm:$0xff]
      %v536 = vld [vmem:[%s296 + $0x22] sm:$0xff]
      %v537 = vld [vmem:[%s296 + $0x32] sm:$0xff]
      %v538 = vld [vmem:[%s296 + $0x42] sm:$0xff]
      %v539 = vld [vmem:[%s296 + $0x52] sm:$0xff]
      %v540 = vld [vmem:[%s296 + $0x62] sm:$0xff]
      %v541 = vld [vmem:[%s296 + $0x72] sm:$0xff]
      %550 = vrot.lane.b32.xlu0 %v534, 20
      %v551 = vpop.permute.xlu0 %550
      %552 = vrot.lane.b32.xlu0 %v535, 20
      %v553 = vpop.permute.xlu0 %552
      %554 = vrot.lane.b32.xlu0 %v536, 20
      %v555 = vpop.permute.xlu0 %554
      %556 = vrot.lane.b32.xlu0 %v537, 20
      %v557 = vpop.permute.xlu0 %556
      %558 = vrot.lane.b32.xlu0 %v538, 20
      %v559 = vpop.permute.xlu0 %558
      %560 = vrot.lane.b32.xlu0 %v539, 20
      %v561 = vpop.permute.xlu0 %560
      %562 = vrot.lane.b32.xlu0 %v540, 20
      %v563 = vpop.permute.xlu0 %562
      %564 = vrot.lane.b32.xlu0 %v541, 20
      %v565 = vpop.permute.xlu0 %564
      %vm574 = vcmask 195744
      %575 = vst.msk [vmem:[#allocation3] sm:$0xff] %vm574, %v551
      %576 = vst.msk [vmem:[#allocation3 + $0x8] sm:$0xff] %vm574, %v553
      %577 = vst.msk [vmem:[#allocation3 + $0x10] sm:$0xff] %vm574, %v555
      %578 = vst.msk [vmem:[#allocation3 + $0x18] sm:$0xff] %vm574, %v557
      %579 = vst.msk [vmem:[#allocation3 + $0x20] sm:$0xff] %vm574, %v559
      %580 = vst.msk [vmem:[#allocation3 + $0x28] sm:$0xff] %vm574, %v561
      %581 = vst.msk [vmem:[#allocation3 + $0x30] sm:$0xff] %vm574, %v563
      %582 = vst.msk [vmem:[#allocation3 + $0x38] sm:$0xff] %vm574, %v565
      %s583 = scalar_lea.vmem [#allocation2], 32
      %v584 = vld [vmem:[%s583] sm:$0xff]
      %v585 = vld [vmem:[%s583 + $0x10] sm:$0xff]
      %v586 = vld [vmem:[%s583 + $0x20] sm:$0xff]
      %v587 = vld [vmem:[%s583 + $0x30] sm:$0xff]
      %v588 = vld [vmem:[%s583 + $0x40] sm:$0xff]
      %v589 = vld [vmem:[%s583 + $0x50] sm:$0xff]
      %v590 = vld [vmem:[%s583 + $0x60] sm:$0xff]
      %v591 = vld [vmem:[%s583 + $0x70] sm:$0xff]
      %600 = vrot.lane.b32.xlu0 %v584, 24
      %v601 = vpop.permute.xlu0 %600
      %602 = vrot.lane.b32.xlu0 %v585, 24
      %v603 = vpop.permute.xlu0 %602
      %604 = vrot.lane.b32.xlu0 %v586, 24
      %v605 = vpop.permute.xlu0 %604
      %606 = vrot.lane.b32.xlu0 %v587, 24
      %v607 = vpop.permute.xlu0 %606
      %608 = vrot.lane.b32.xlu0 %v588, 24
      %v609 = vpop.permute.xlu0 %608
      %610 = vrot.lane.b32.xlu0 %v589, 24
      %v611 = vpop.permute.xlu0 %610
      %612 = vrot.lane.b32.xlu0 %v590, 24
      %v613 = vpop.permute.xlu0 %612
      %614 = vrot.lane.b32.xlu0 %v591, 24
      %v615 = vpop.permute.xlu0 %614
      %vm624 = vcmask 228544
      %625 = vst.msk [vmem:[#allocation3] sm:$0xff] %vm624, %v601
      %626 = vst.msk [vmem:[#allocation3 + $0x8] sm:$0xff] %vm624, %v603
      %627 = vst.msk [vmem:[#allocation3 + $0x10] sm:$0xff] %vm624, %v605
      %628 = vst.msk [vmem:[#allocation3 + $0x18] sm:$0xff] %vm624, %v607
      %629 = vst.msk [vmem:[#allocation3 + $0x20] sm:$0xff] %vm624, %v609
      %630 = vst.msk [vmem:[#allocation3 + $0x28] sm:$0xff] %vm624, %v611
      %631 = vst.msk [vmem:[#allocation3 + $0x30] sm:$0xff] %vm624, %v613
      %632 = vst.msk [vmem:[#allocation3 + $0x38] sm:$0xff] %vm624, %v615
      %v633 = vld [vmem:[%s583 + $0x1] sm:$0xff]
      %v634 = vld [vmem:[%s583 + $0x11] sm:$0xff]
      %v635 = vld [vmem:[%s583 + $0x21] sm:$0xff]
      %v636 = vld [vmem:[%s583 + $0x31] sm:$0xff]
      %v637 = vld [vmem:[%s583 + $0x41] sm:$0xff]
      %v638 = vld [vmem:[%s583 + $0x51] sm:$0xff]
      %v639 = vld [vmem:[%s583 + $0x61] sm:$0xff]
      %v640 = vld [vmem:[%s583 + $0x71] sm:$0xff]
      %649 = vrot.lane.b32.xlu0 %v633, 28
      %v650 = vpop.permute.xlu0 %649
      %651 = vrot.lane.b32.xlu0 %v634, 28
      %v652 = vpop.permute.xlu0 %651
      %653 = vrot.lane.b32.xlu0 %v635, 28
      %v654 = vpop.permute.xlu0 %653
      %655 = vrot.lane.b32.xlu0 %v636, 28
      %v656 = vpop.permute.xlu0 %655
      %657 = vrot.lane.b32.xlu0 %v637, 28
      %v658 = vpop.permute.xlu0 %657
      %659 = vrot.lane.b32.xlu0 %v638, 28
      %v660 = vpop.permute.xlu0 %659
      %661 = vrot.lane.b32.xlu0 %v639, 28
      %v662 = vpop.permute.xlu0 %661
      %663 = vrot.lane.b32.xlu0 %v640, 28
      %v664 = vpop.permute.xlu0 %663
      %vm673 = vcmask 261344
      %674 = vst.msk [vmem:[#allocation3] sm:$0xff] %vm673, %v650
      %675 = vst.msk [vmem:[#allocation3 + $0x8] sm:$0xff] %vm673, %v652
      %676 = vst.msk [vmem:[#allocation3 + $0x10] sm:$0xff] %vm673, %v654
      %677 = vst.msk [vmem:[#allocation3 + $0x18] sm:$0xff] %vm673, %v656
      %678 = vst.msk [vmem:[#allocation3 + $0x20] sm:$0xff] %vm673, %v658
      %679 = vst.msk [vmem:[#allocation3 + $0x28] sm:$0xff] %vm673, %v660
      %680 = vst.msk [vmem:[#allocation3 + $0x30] sm:$0xff] %vm673, %v662
      %681 = vst.msk [vmem:[#allocation3 + $0x38] sm:$0xff] %vm673, %v664
      %v682 = vld [vmem:[%s583 + $0x2] sm:$0xff]
      %v683 = vld [vmem:[%s583 + $0x12] sm:$0xff]
      %v684 = vld [vmem:[%s583 + $0x22] sm:$0xff]
      %v685 = vld [vmem:[%s583 + $0x32] sm:$0xff]
      %v686 = vld [vmem:[%s583 + $0x42] sm:$0xff]
      %v687 = vld [vmem:[%s583 + $0x52] sm:$0xff]
      %v688 = vld [vmem:[%s583 + $0x62] sm:$0xff]
      %v689 = vld [vmem:[%s583 + $0x72] sm:$0xff]
      %698 = vrot.lane.b32.xlu0 %v682, 32
      %v699 = vpop.permute.xlu0 %698
      %700 = vrot.lane.b32.xlu0 %v683, 32
      %v701 = vpop.permute.xlu0 %700
      %702 = vrot.lane.b32.xlu0 %v684, 32
      %v703 = vpop.permute.xlu0 %702
      %704 = vrot.lane.b32.xlu0 %v685, 32
      %v705 = vpop.permute.xlu0 %704
      %706 = vrot.lane.b32.xlu0 %v686, 32
      %v707 = vpop.permute.xlu0 %706
      %708 = vrot.lane.b32.xlu0 %v687, 32
      %v709 = vpop.permute.xlu0 %708
      %710 = vrot.lane.b32.xlu0 %v688, 32
      %v711 = vpop.permute.xlu0 %710
      %712 = vrot.lane.b32.xlu0 %v689, 32
      %v713 = vpop.permute.xlu0 %712
      %vm722 = vcmask 294144
      %723 = vst.msk [vmem:[#allocation3] sm:$0xff] %vm722, %v699
      %724 = vst.msk [vmem:[#allocation3 + $0x8] sm:$0xff] %vm722, %v701
      %725 = vst.msk [vmem:[#allocation3 + $0x10] sm:$0xff] %vm722, %v703
      %726 = vst.msk [vmem:[#allocation3 + $0x18] sm:$0xff] %vm722, %v705
      %727 = vst.msk [vmem:[#allocation3 + $0x20] sm:$0xff] %vm722, %v707
      %728 = vst.msk [vmem:[#allocation3 + $0x28] sm:$0xff] %vm722, %v709
      %729 = vst.msk [vmem:[#allocation3 + $0x30] sm:$0xff] %vm722, %v711
      %730 = vst.msk [vmem:[#allocation3 + $0x38] sm:$0xff] %vm722, %v713
      %v731 = vld [vmem:[#allocation3] sm:$0xff]
      %v732 = vld [vmem:[#allocation3 + $0x8] sm:$0xff]
      %v733 = vld [vmem:[#allocation3 + $0x10] sm:$0xff]
      %v734 = vld [vmem:[#allocation3 + $0x18] sm:$0xff]
      %v735 = vld [vmem:[#allocation3 + $0x20] sm:$0xff]
      %v736 = vld [vmem:[#allocation3 + $0x28] sm:$0xff]
      %v737 = vld [vmem:[#allocation3 + $0x30] sm:$0xff]
      %v738 = vld [vmem:[#allocation3 + $0x38] sm:$0xff]
      %v739 = vld [vmem:[%s1] sm:$0xff]
      %v740 = vld [vmem:[%s1 + $0x8] sm:$0xff]
      %v741 = vld [vmem:[%s1 + $0x10] sm:$0xff]
      %v742 = vld [vmem:[%s1 + $0x18] sm:$0xff]
      %v743 = vld [vmem:[%s1 + $0x20] sm:$0xf]
      %v744 = vld [vmem:[%s2] sm:$0x1]
      %v746 = vlaneseq
      %v747 = vshrl.u32 %v746, 7
      %v748 = vsub.s32 0, %v747
      %v749 = vrot.slane %v744, %v748
      %vm751 = vcmask 293888
      %v753 = vsel %vm751, %v731, 0
      %v756 = vsel %vm751, %v732, 0
      %v759 = vsel %vm751, %v733, 0
      %v762 = vsel %vm751, %v734, 0
      %v765 = vsel %vm751, %v735, 0
      %v768 = vsel %vm751, %v736, 0
      %v771 = vsel %vm751, %v737, 0
      %v774 = vsel %vm751, %v738, 0
      %vm776 = vcmask 1043456
      %v778 = vsel %vm776, %v743, 0
      %780 = vmatprep.subr.mxu0 0.0
      %781 = vmatpush1.msra.mxu0 %v739
      %782 = vmatprep.subr.mxu0 0.0
      %783 = vmatpush1.msra.mxu0 %v740
      %784 = vmatprep.subr.mxu0 0.0
      %785 = vmatpush1.msra.mxu0 %v741
      %786 = vmatprep.subr.mxu0 0.0
      %787 = vmatpush1.msra.mxu0 %v742
      %788 = vmatprep.subr.mxu0 0.0
      %789 = vmatpush1.msra.mxu0 %v778
      %790 = vmatprep.subr.mxu0 0.0
      %791 = vmatpush1.msra.mxu0 0.0
      %792 = vmatprep.subr.mxu0 0.0
      %793 = vmatpush1.msra.mxu0 0.0
      %794 = vmatprep.subr.mxu0 0.0
      %795 = vmatpush1.msra.mxu0 0.0
      %796 = vmatprep.subr.mxu0 0.0
      %797 = vmatpush1.msra.mxu0 0.0
      %798 = vmatprep.subr.mxu0 0.0
      %799 = vmatpush1.msra.mxu0 0.0
      %800 = vmatprep.subr.mxu0 0.0
      %801 = vmatpush1.msra.mxu0 0.0
      %802 = vmatprep.subr.mxu0 0.0
      %803 = vmatpush1.msra.mxu0 0.0
      %804 = vmatprep.subr.mxu0 0.0
      %805 = vmatpush1.msra.mxu0 0.0
      %806 = vmatprep.subr.mxu0 0.0
      %807 = vmatpush1.msra.mxu0 0.0
      %808 = vmatprep.subr.mxu0 0.0
      %809 = vmatpush1.msra.mxu0 0.0
      %810 = vmatprep.subr.mxu0 0.0
      %811 = vmatpush1.msra.mxu0 0.0
      %812 = vmatprep.subr.mxu0 0.0
      %813 = vmatpush1.msra.mxu0 0.0
      %814 = vmatprep.subr.mxu0 0.0
      %815 = vmatpush1.msra.mxu0 0.0
      %816 = vmatprep.subr.mxu0 0.0
      %817 = vmatpush1.msra.mxu0 0.0
      %818 = vmatprep.subr.mxu0 0.0
      %819 = vmatpush1.msra.mxu0 0.0
      %820 = vmatprep.subr.mxu0 0.0
      %821 = vmatpush1.msra.mxu0 0.0
      %822 = vmatprep.subr.mxu0 0.0
      %823 = vmatpush1.msra.mxu0 0.0
      %824 = vmatprep.subr.mxu0 0.0
      %825 = vmatpush1.msra.mxu0 0.0
      %826 = vmatprep.subr.mxu0 0.0
      %827 = vmatpush1.msra.mxu0 0.0
      %828 = vmatprep.subr.mxu0 0.0
      %829 = vmatpush1.msra.mxu0 0.0
      %830 = vmatprep.subr.mxu0 0.0
      %831 = vmatpush1.msra.mxu0 0.0
      %832 = vmatprep.subr.mxu0 0.0
      %833 = vmatpush1.msra.mxu0 0.0
      %834 = vmatprep.subr.mxu0 0.0
      %835 = vmatpush1.msra.mxu0 0.0
      %836 = vmatprep.subr.mxu0 0.0
      %837 = vmatpush1.msra.mxu0 0.0
      %838 = vmatprep.subr.mxu0 0.0
      %839 = vmatpush1.msra.mxu0 0.0
      %840 = vmatprep.subr.mxu0 0.0
      %841 = vmatpush1.msra.mxu0 0.0
      %842 = vmatprep.subr.mxu0 0.0
      %843 = vmatpush1.msra.mxu0 0.0
      %844 = vmatprep.mubr.f32.mxu0 0.0
      %845 = vmatmul.mubr.f32.gmra.mrb[0].mxu0 %v753
      %v846 = vpop.f32.mrb[0].mxu0
      %v847 = vadd.f32 %v749, %v846
      %v848 = vpop.f32.mrb[0].mxu0
      %849 = vmatprep.mubr.f32.mxu0 0.0
      %850 = vmatmul.mubr.f32.gmra.mrb[0].mxu0 %v756
      %v851 = vpop.f32.mrb[0].mxu0
      %v852 = vadd.f32 %v749, %v851
      %v853 = vpop.f32.mrb[0].mxu0
      %854 = vmatprep.mubr.f32.mxu0 0.0
      %855 = vmatmul.mubr.f32.gmra.mrb[0].mxu0 %v759
      %v856 = vpop.f32.mrb[0].mxu0
      %v857 = vadd.f32 %v749, %v856
      %v858 = vpop.f32.mrb[0].mxu0
      %859 = vmatprep.mubr.f32.mxu0 0.0
      %860 = vmatmul.mubr.f32.gmra.mrb[0].mxu0 %v762
      %v861 = vpop.f32.mrb[0].mxu0
      %v862 = vadd.f32 %v749, %v861
      %v863 = vpop.f32.mrb[0].mxu0
      %864 = vmatprep.mubr.f32.mxu0 0.0
      %865 = vmatmul.mubr.f32.gmra.mrb[0].mxu0 %v765
      %v866 = vpop.f32.mrb[0].mxu0
      %v867 = vadd.f32 %v749, %v866
      %v868 = vpop.f32.mrb[0].mxu0
      %869 = vmatprep.mubr.f32.mxu0 0.0
      %870 = vmatmul.mubr.f32.gmra.mrb[0].mxu0 %v768
      %v871 = vpop.f32.mrb[0].mxu0
      %v872 = vadd.f32 %v749, %v871
      %v873 = vpop.f32.mrb[0].mxu0
      %874 = vmatprep.mubr.f32.mxu0 0.0
      %875 = vmatmul.mubr.f32.gmra.mrb[0].mxu0 %v771
      %v876 = vpop.f32.mrb[0].mxu0
      %v877 = vadd.f32 %v749, %v876
      %v878 = vpop.f32.mrb[0].mxu0
      %879 = vmatprep.mubr.f32.mxu0 0.0
      %880 = vmatmul.mubr.f32.gmra.mrb[0].mxu0 %v774
      %v881 = vpop.f32.mrb[0].mxu0
      %v882 = vadd.f32 %v749, %v881
      %v883 = vpop.f32.mrb[0].mxu0
      %884 = vdwg.mxu0
      %v885 = vmax.f32 %v847, 0.0
      %v886 = vmax.f32 %v852, 0.0
      %v887 = vmax.f32 %v857, 0.0
      %v888 = vmax.f32 %v862, 0.0
      %v889 = vmax.f32 %v867, 0.0
      %v890 = vmax.f32 %v872, 0.0
      %v891 = vmax.f32 %v877, 0.0
      %v892 = vmax.f32 %v882, 0.0
      %vm893 = vcmask 64512
      %894 = vst.msk [vmem:[#allocation4] sm:$0xff] %vm893, 0.0
      %vm895 = vcmask 58368
      %896 = vst.msk [vmem:[#allocation4 + $0x8] sm:$0x3] %vm895, 0.0
      %s897 = scalar_lea.vmem [#allocation4], 144
      %898 = vst.msk [vmem:[%s897] sm:$0xff] %vm893, 0.0
      %899 = vst.msk [vmem:[%s897 + $0x8] sm:$0x3] %vm895, 0.0
      %s900 = scalar_lea.vmem [#allocation4], 16
      %vm901 = vcmask 57344
      %902 = vst.msk [vmem:[%s900] sm:$0x1] %vm901, 0.0
      %903 = vst.msk [vmem:[%s900 + $0x10] sm:$0x1] %vm901, 0.0
      %904 = vst.msk [vmem:[%s900 + $0x20] sm:$0x1] %vm901, 0.0
      %905 = vst.msk [vmem:[%s900 + $0x30] sm:$0x1] %vm901, 0.0
      %906 = vst.msk [vmem:[%s900 + $0x40] sm:$0x1] %vm901, 0.0
      %907 = vst.msk [vmem:[%s900 + $0x50] sm:$0x1] %vm901, 0.0
      %908 = vst.msk [vmem:[%s900 + $0x60] sm:$0x1] %vm901, 0.0
      %909 = vst.msk [vmem:[%s900 + $0x70] sm:$0x1] %vm901, 0.0
      %910 = vst.msk [vmem:[%s900 + $0x9] sm:$0x1] %vm901, 0.0
      %911 = vst.msk [vmem:[%s900 + $0x19] sm:$0x1] %vm901, 0.0
      %912 = vst.msk [vmem:[%s900 + $0x29] sm:$0x1] %vm901, 0.0
      %913 = vst.msk [vmem:[%s900 + $0x39] sm:$0x1] %vm901, 0.0
      %914 = vst.msk [vmem:[%s900 + $0x49] sm:$0x1] %vm901, 0.0
      %915 = vst.msk [vmem:[%s900 + $0x59] sm:$0x1] %vm901, 0.0
      %916 = vst.msk [vmem:[%s900 + $0x69] sm:$0x1] %vm901, 0.0
      %917 = vst.msk [vmem:[%s900 + $0x79] sm:$0x1] %vm901, 0.0
      %918 = vst.msk [vmem:[%s900 + $0x1] sm:$0xff] %vm893, %v885
      %919 = vst.msk [vmem:[%s900 + $0x11] sm:$0xff] %vm893, %v886
      %920 = vst.msk [vmem:[%s900 + $0x21] sm:$0xff] %vm893, %v887
      %921 = vst.msk [vmem:[%s900 + $0x31] sm:$0xff] %vm893, %v888
      %922 = vst.msk [vmem:[%s900 + $0x41] sm:$0xff] %vm893, %v889
      %923 = vst.msk [vmem:[%s900 + $0x51] sm:$0xff] %vm893, %v890
      %924 = vst.msk [vmem:[%s900 + $0x61] sm:$0xff] %vm893, %v891
      %925 = vst.msk [vmem:[%s900 + $0x71] sm:$0xff] %vm893, %v892
      %v926 = vld [vmem:[#allocation4] sm:$0xff]
      %v927 = vld [vmem:[#allocation4 + $0x10] sm:$0xff]
      %v928 = vld [vmem:[#allocation4 + $0x20] sm:$0xff]
      %v929 = vld [vmem:[#allocation4 + $0x30] sm:$0xff]
      %v930 = vld [vmem:[#allocation4 + $0x40] sm:$0xff]
      %v931 = vld [vmem:[#allocation4 + $0x50] sm:$0xff]
      %v932 = vld [vmem:[#allocation4 + $0x60] sm:$0xff]
      %v933 = vld [vmem:[#allocation4 + $0x70] sm:$0xff]
      %934 = vst.msk [vmem:[#allocation5] sm:$0xff] %vm893, %v926
      %935 = vst.msk [vmem:[#allocation5 + $0x8] sm:$0xff] %vm893, %v927
      %936 = vst.msk [vmem:[#allocation5 + $0x10] sm:$0xff] %vm893, %v928
      %937 = vst.msk [vmem:[#allocation5 + $0x18] sm:$0xff] %vm893, %v929
      %938 = vst.msk [vmem:[#allocation5 + $0x20] sm:$0xff] %vm893, %v930
      %939 = vst.msk [vmem:[#allocation5 + $0x28] sm:$0xff] %vm893, %v931
      %940 = vst.msk [vmem:[#allocation5 + $0x30] sm:$0xff] %vm893, %v932
      %941 = vst.msk [vmem:[#allocation5 + $0x38] sm:$0xff] %vm893, %v933
      %v942 = vld [vmem:[#allocation4 + $0x1] sm:$0xff]
      %v943 = vld [vmem:[#allocation4 + $0x11] sm:$0xff]
      %v944 = vld [vmem:[#allocation4 + $0x21] sm:$0xff]
      %v945 = vld [vmem:[#allocation4 + $0x31] sm:$0xff]
      %v946 = vld [vmem:[#allocation4 + $0x41] sm:$0xff]
      %v947 = vld [vmem:[#allocation4 + $0x51] sm:$0xff]
      %v948 = vld [vmem:[#allocation4 + $0x61] sm:$0xff]
      %v949 = vld [vmem:[#allocation4 + $0x71] sm:$0xff]
      %958 = vrot.lane.b32.xlu0 %v942, 8
      %v959 = vpop.permute.xlu0 %958
      %960 = vrot.lane.b32.xlu0 %v943, 8
      %v961 = vpop.permute.xlu0 %960
      %962 = vrot.lane.b32.xlu0 %v944, 8
      %v963 = vpop.permute.xlu0 %962
      %964 = vrot.lane.b32.xlu0 %v945, 8
      %v965 = vpop.permute.xlu0 %964
      %966 = vrot.lane.b32.xlu0 %v946, 8
      %v967 = vpop.permute.xlu0 %966
      %968 = vrot.lane.b32.xlu0 %v947, 8
      %v969 = vpop.permute.xlu0 %968
      %970 = vrot.lane.b32.xlu0 %v948, 8
      %v971 = vpop.permute.xlu0 %970
      %972 = vrot.lane.b32.xlu0 %v949, 8
      %v973 = vpop.permute.xlu0 %972
      %vm982 = vcmask 130112
      %983 = vst.msk [vmem:[#allocation5] sm:$0xff] %vm982, %v959
      %984 = vst.msk [vmem:[#allocation5 + $0x8] sm:$0xff] %vm982, %v961
      %985 = vst.msk [vmem:[#allocation5 + $0x10] sm:$0xff] %vm982, %v963
      %986 = vst.msk [vmem:[#allocation5 + $0x18] sm:$0xff] %vm982, %v965
      %987 = vst.msk [vmem:[#allocation5 + $0x20] sm:$0xff] %vm982, %v967
      %988 = vst.msk [vmem:[#allocation5 + $0x28] sm:$0xff] %vm982, %v969
      %989 = vst.msk [vmem:[#allocation5 + $0x30] sm:$0xff] %vm982, %v971
      %990 = vst.msk [vmem:[#allocation5 + $0x38] sm:$0xff] %vm982, %v973
      %v991 = vld [vmem:[#allocation4 + $0x2] sm:$0xff]
      %v992 = vld [vmem:[#allocation4 + $0x12] sm:$0xff]
      %v993 = vld [vmem:[#allocation4 + $0x22] sm:$0xff]
      %v994 = vld [vmem:[#allocation4 + $0x32] sm:$0xff]
      %v995 = vld [vmem:[#allocation4 + $0x42] sm:$0xff]
      %v996 = vld [vmem:[#allocation4 + $0x52] sm:$0xff]
      %v997 = vld [vmem:[#allocation4 + $0x62] sm:$0xff]
      %v998 = vld [vmem:[#allocation4 + $0x72] sm:$0xff]
      %1007 = vrot.lane.b32.xlu0 %v991, 16
      %v1008 = vpop.permute.xlu0 %1007
      %1009 = vrot.lane.b32.xlu0 %v992, 16
      %v1010 = vpop.permute.xlu0 %1009
      %1011 = vrot.lane.b32.xlu0 %v993, 16
      %v1012 = vpop.permute.xlu0 %1011
      %1013 = vrot.lane.b32.xlu0 %v994, 16
      %v1014 = vpop.permute.xlu0 %1013
      %1015 = vrot.lane.b32.xlu0 %v995, 16
      %v1016 = vpop.permute.xlu0 %1015
      %1017 = vrot.lane.b32.xlu0 %v996, 16
      %v1018 = vpop.permute.xlu0 %1017
      %1019 = vrot.lane.b32.xlu0 %v997, 16
      %v1020 = vpop.permute.xlu0 %1019
      %1021 = vrot.lane.b32.xlu0 %v998, 16
      %v1022 = vpop.permute.xlu0 %1021
      %vm1031 = vcmask 195712
      %1032 = vst.msk [vmem:[#allocation5] sm:$0xff] %vm1031, %v1008
      %1033 = vst.msk [vmem:[#allocation5 + $0x8] sm:$0xff] %vm1031, %v1010
      %1034 = vst.msk [vmem:[#allocation5 + $0x10] sm:$0xff] %vm1031, %v1012
      %1035 = vst.msk [vmem:[#allocation5 + $0x18] sm:$0xff] %vm1031, %v1014
      %1036 = vst.msk [vmem:[#allocation5 + $0x20] sm:$0xff] %vm1031, %v1016
      %1037 = vst.msk [vmem:[#allocation5 + $0x28] sm:$0xff] %vm1031, %v1018
      %1038 = vst.msk [vmem:[#allocation5 + $0x30] sm:$0xff] %vm1031, %v1020
      %1039 = vst.msk [vmem:[#allocation5 + $0x38] sm:$0xff] %vm1031, %v1022
      %v1040 = vld [vmem:[%s900] sm:$0xff]
      %v1041 = vld [vmem:[%s900 + $0x10] sm:$0xff]
      %v1042 = vld [vmem:[%s900 + $0x20] sm:$0xff]
      %v1043 = vld [vmem:[%s900 + $0x30] sm:$0xff]
      %v1044 = vld [vmem:[%s900 + $0x40] sm:$0xff]
      %v1045 = vld [vmem:[%s900 + $0x50] sm:$0xff]
      %v1046 = vld [vmem:[%s900 + $0x60] sm:$0xff]
      %v1047 = vld [vmem:[%s900 + $0x70] sm:$0xff]
      %1056 = vrot.lane.b32.xlu0 %v1040, 24
      %v1057 = vpop.permute.xlu0 %1056
      %1058 = vrot.lane.b32.xlu0 %v1041, 24
      %v1059 = vpop.permute.xlu0 %1058
      %1060 = vrot.lane.b32.xlu0 %v1042, 24
      %v1061 = vpop.permute.xlu0 %1060
      %1062 = vrot.lane.b32.xlu0 %v1043, 24
      %v1063 = vpop.permute.xlu0 %1062
      %1064 = vrot.lane.b32.xlu0 %v1044, 24
      %v1065 = vpop.permute.xlu0 %1064
      %1066 = vrot.lane.b32.xlu0 %v1045, 24
      %v1067 = vpop.permute.xlu0 %1066
      %1068 = vrot.lane.b32.xlu0 %v1046, 24
      %v1069 = vpop.permute.xlu0 %1068
      %1070 = vrot.lane.b32.xlu0 %v1047, 24
      %v1071 = vpop.permute.xlu0 %1070
      %vm1080 = vcmask 261312
      %1081 = vst.msk [vmem:[#allocation5] sm:$0xff] %vm1080, %v1057
      %1082 = vst.msk [vmem:[#allocation5 + $0x8] sm:$0xff] %vm1080, %v1059
      %1083 = vst.msk [vmem:[#allocation5 + $0x10] sm:$0xff] %vm1080, %v1061
      %1084 = vst.msk [vmem:[#allocation5 + $0x18] sm:$0xff] %vm1080, %v1063
      %1085 = vst.msk [vmem:[#allocation5 + $0x20] sm:$0xff] %vm1080, %v1065
      %1086 = vst.msk [vmem:[#allocation5 + $0x28] sm:$0xff] %vm1080, %v1067
      %1087 = vst.msk [vmem:[#allocation5 + $0x30] sm:$0xff] %vm1080, %v1069
      %1088 = vst.msk [vmem:[#allocation5 + $0x38] sm:$0xff] %vm1080, %v1071
      %v1089 = vld [vmem:[%s900 + $0x1] sm:$0xff]
      %v1090 = vld [vmem:[%s900 + $0x11] sm:$0xff]
      %v1091 = vld [vmem:[%s900 + $0x21] sm:$0xff]
      %v1092 = vld [vmem:[%s900 + $0x31] sm:$0xff]
      %v1093 = vld [vmem:[%s900 + $0x41] sm:$0xff]
      %v1094 = vld [vmem:[%s900 + $0x51] sm:$0xff]
      %v1095 = vld [vmem:[%s900 + $0x61] sm:$0xff]
      %v1096 = vld [vmem:[%s900 + $0x71] sm:$0xff]
      %1105 = vrot.lane.b32.xlu0 %v1089, 32
      %v1106 = vpop.permute.xlu0 %1105
      %1107 = vrot.lane.b32.xlu0 %v1090, 32
      %v1108 = vpop.permute.xlu0 %1107
      %1109 = vrot.lane.b32.xlu0 %v1091, 32
      %v1110 = vpop.permute.xlu0 %1109
      %1111 = vrot.lane.b32.xlu0 %v1092, 32
      %v1112 = vpop.permute.xlu0 %1111
      %1113 = vrot.lane.b32.xlu0 %v1093, 32
      %v1114 = vpop.permute.xlu0 %1113
      %1115 = vrot.lane.b32.xlu0 %v1094, 32
      %v1116 = vpop.permute.xlu0 %1115
      %1117 = vrot.lane.b32.xlu0 %v1095, 32
      %v1118 = vpop.permute.xlu0 %1117
      %1119 = vrot.lane.b32.xlu0 %v1096, 32
      %v1120 = vpop.permute.xlu0 %1119
      %vm1129 = vcmask 326912
      %1130 = vst.msk [vmem:[#allocation5] sm:$0xff] %vm1129, %v1106
      %1131 = vst.msk [vmem:[#allocation5 + $0x8] sm:$0xff] %vm1129, %v1108
      %1132 = vst.msk [vmem:[#allocation5 + $0x10] sm:$0xff] %vm1129, %v1110
      %1133 = vst.msk [vmem:[#allocation5 + $0x18] sm:$0xff] %vm1129, %v1112
      %1134 = vst.msk [vmem:[#allocation5 + $0x20] sm:$0xff] %vm1129, %v1114
      %1135 = vst.msk [vmem:[#allocation5 + $0x28] sm:$0xff] %vm1129, %v1116
      %1136 = vst.msk [vmem:[#allocation5 + $0x30] sm:$0xff] %vm1129, %v1118
      %1137 = vst.msk [vmem:[#allocation5 + $0x38] sm:$0xff] %vm1129, %v1120
      %v1138 = vld [vmem:[%s900 + $0x2] sm:$0xff]
      %v1139 = vld [vmem:[%s900 + $0x12] sm:$0xff]
      %v1140 = vld [vmem:[%s900 + $0x22] sm:$0xff]
      %v1141 = vld [vmem:[%s900 + $0x32] sm:$0xff]
      %v1142 = vld [vmem:[%s900 + $0x42] sm:$0xff]
      %v1143 = vld [vmem:[%s900 + $0x52] sm:$0xff]
      %v1144 = vld [vmem:[%s900 + $0x62] sm:$0xff]
      %v1145 = vld [vmem:[%s900 + $0x72] sm:$0xff]
      %1154 = vrot.lane.b32.xlu0 %v1138, 40
      %v1155 = vpop.permute.xlu0 %1154
      %1156 = vrot.lane.b32.xlu0 %v1139, 40
      %v1157 = vpop.permute.xlu0 %1156
      %1158 = vrot.lane.b32.xlu0 %v1140, 40
      %v1159 = vpop.permute.xlu0 %1158
      %1160 = vrot.lane.b32.xlu0 %v1141, 40
      %v1161 = vpop.permute.xlu0 %1160
      %1162 = vrot.lane.b32.xlu0 %v1142, 40
      %v1163 = vpop.permute.xlu0 %1162
      %1164 = vrot.lane.b32.xlu0 %v1143, 40
      %v1165 = vpop.permute.xlu0 %1164
      %1166 = vrot.lane.b32.xlu0 %v1144, 40
      %v1167 = vpop.permute.xlu0 %1166
      %1168 = vrot.lane.b32.xlu0 %v1145, 40
      %v1169 = vpop.permute.xlu0 %1168
      %vm1178 = vcmask 392512
      %1179 = vst.msk [vmem:[#allocation5] sm:$0xff] %vm1178, %v1155
      %1180 = vst.msk [vmem:[#allocation5 + $0x8] sm:$0xff] %vm1178, %v1157
      %1181 = vst.msk [vmem:[#allocation5 + $0x10] sm:$0xff] %vm1178, %v1159
      %1182 = vst.msk [vmem:[#allocation5 + $0x18] sm:$0xff] %vm1178, %v1161
      %1183 = vst.msk [vmem:[#allocation5 + $0x20] sm:$0xff] %vm1178, %v1163
      %1184 = vst.msk [vmem:[#allocation5 + $0x28] sm:$0xff] %vm1178, %v1165
      %1185 = vst.msk [vmem:[#allocation5 + $0x30] sm:$0xff] %vm1178, %v1167
      %1186 = vst.msk [vmem:[#allocation5 + $0x38] sm:$0xff] %vm1178, %v1169
      %s1187 = scalar_lea.vmem [#allocation4], 32
      %v1188 = vld [vmem:[%s1187] sm:$0xff]
      %v1189 = vld [vmem:[%s1187 + $0x10] sm:$0xff]
      %v1190 = vld [vmem:[%s1187 + $0x20] sm:$0xff]
      %v1191 = vld [vmem:[%s1187 + $0x30] sm:$0xff]
      %v1192 = vld [vmem:[%s1187 + $0x40] sm:$0xff]
      %v1193 = vld [vmem:[%s1187 + $0x50] sm:$0xff]
      %v1194 = vld [vmem:[%s1187 + $0x60] sm:$0xff]
      %v1195 = vld [vmem:[%s1187 + $0x70] sm:$0xff]
      %1204 = vrot.lane.b32.xlu0 %v1188, 48
      %v1205 = vpop.permute.xlu0 %1204
      %1206 = vrot.lane.b32.xlu0 %v1189, 48
      %v1207 = vpop.permute.xlu0 %1206
      %1208 = vrot.lane.b32.xlu0 %v1190, 48
      %v1209 = vpop.permute.xlu0 %1208
      %1210 = vrot.lane.b32.xlu0 %v1191, 48
      %v1211 = vpop.permute.xlu0 %1210
      %1212 = vrot.lane.b32.xlu0 %v1192, 48
      %v1213 = vpop.permute.xlu0 %1212
      %1214 = vrot.lane.b32.xlu0 %v1193, 48
      %v1215 = vpop.permute.xlu0 %1214
      %1216 = vrot.lane.b32.xlu0 %v1194, 48
      %v1217 = vpop.permute.xlu0 %1216
      %1218 = vrot.lane.b32.xlu0 %v1195, 48
      %v1219 = vpop.permute.xlu0 %1218
      %vm1228 = vcmask 458112
      %1229 = vst.msk [vmem:[#allocation5] sm:$0xff] %vm1228, %v1205
      %1230 = vst.msk [vmem:[#allocation5 + $0x8] sm:$0xff] %vm1228, %v1207
      %1231 = vst.msk [vmem:[#allocation5 + $0x10] sm:$0xff] %vm1228, %v1209
      %1232 = vst.msk [vmem:[#allocation5 + $0x18] sm:$0xff] %vm1228, %v1211
      %1233 = vst.msk [vmem:[#allocation5 + $0x20] sm:$0xff] %vm1228, %v1213
      %1234 = vst.msk [vmem:[#allocation5 + $0x28] sm:$0xff] %vm1228, %v1215
      %1235 = vst.msk [vmem:[#allocation5 + $0x30] sm:$0xff] %vm1228, %v1217
      %1236 = vst.msk [vmem:[#allocation5 + $0x38] sm:$0xff] %vm1228, %v1219
      %v1237 = vld [vmem:[%s1187 + $0x1] sm:$0xff]
      %v1238 = vld [vmem:[%s1187 + $0x11] sm:$0xff]
      %v1239 = vld [vmem:[%s1187 + $0x21] sm:$0xff]
      %v1240 = vld [vmem:[%s1187 + $0x31] sm:$0xff]
      %v1241 = vld [vmem:[%s1187 + $0x41] sm:$0xff]
      %v1242 = vld [vmem:[%s1187 + $0x51] sm:$0xff]
      %v1243 = vld [vmem:[%s1187 + $0x61] sm:$0xff]
      %v1244 = vld [vmem:[%s1187 + $0x71] sm:$0xff]
      %1253 = vrot.lane.b32.xlu0 %v1237, 56
      %v1254 = vpop.permute.xlu0 %1253
      %1255 = vrot.lane.b32.xlu0 %v1238, 56
      %v1256 = vpop.permute.xlu0 %1255
      %1257 = vrot.lane.b32.xlu0 %v1239, 56
      %v1258 = vpop.permute.xlu0 %1257
      %1259 = vrot.lane.b32.xlu0 %v1240, 56
      %v1260 = vpop.permute.xlu0 %1259
      %1261 = vrot.lane.b32.xlu0 %v1241, 56
      %v1262 = vpop.permute.xlu0 %1261
      %1263 = vrot.lane.b32.xlu0 %v1242, 56
      %v1264 = vpop.permute.xlu0 %1263
      %1265 = vrot.lane.b32.xlu0 %v1243, 56
      %v1266 = vpop.permute.xlu0 %1265
      %1267 = vrot.lane.b32.xlu0 %v1244, 56
      %v1268 = vpop.permute.xlu0 %1267
      %vm1277 = vcmask 523712
      %1278 = vst.msk [vmem:[#allocation5] sm:$0xff] %vm1277, %v1254
      %1279 = vst.msk [vmem:[#allocation5 + $0x8] sm:$0xff] %vm1277, %v1256
      %1280 = vst.msk [vmem:[#allocation5 + $0x10] sm:$0xff] %vm1277, %v1258
      %1281 = vst.msk [vmem:[#allocation5 + $0x18] sm:$0xff] %vm1277, %v1260
      %1282 = vst.msk [vmem:[#allocation5 + $0x20] sm:$0xff] %vm1277, %v1262
      %1283 = vst.msk [vmem:[#allocation5 + $0x28] sm:$0xff] %vm1277, %v1264
      %1284 = vst.msk [vmem:[#allocation5 + $0x30] sm:$0xff] %vm1277, %v1266
      %1285 = vst.msk [vmem:[#allocation5 + $0x38] sm:$0xff] %vm1277, %v1268
      %v1286 = vld [vmem:[%s1187 + $0x2] sm:$0xff]
      %v1287 = vld [vmem:[%s1187 + $0x12] sm:$0xff]
      %v1288 = vld [vmem:[%s1187 + $0x22] sm:$0xff]
      %v1289 = vld [vmem:[%s1187 + $0x32] sm:$0xff]
      %v1290 = vld [vmem:[%s1187 + $0x42] sm:$0xff]
      %v1291 = vld [vmem:[%s1187 + $0x52] sm:$0xff]
      %v1292 = vld [vmem:[%s1187 + $0x62] sm:$0xff]
      %v1293 = vld [vmem:[%s1187 + $0x72] sm:$0xff]
      %1302 = vrot.lane.b32.xlu0 %v1286, 64
      %v1303 = vpop.permute.xlu0 %1302
      %1304 = vrot.lane.b32.xlu0 %v1287, 64
      %v1305 = vpop.permute.xlu0 %1304
      %1306 = vrot.lane.b32.xlu0 %v1288, 64
      %v1307 = vpop.permute.xlu0 %1306
      %1308 = vrot.lane.b32.xlu0 %v1289, 64
      %v1309 = vpop.permute.xlu0 %1308
      %1310 = vrot.lane.b32.xlu0 %v1290, 64
      %v1311 = vpop.permute.xlu0 %1310
      %1312 = vrot.lane.b32.xlu0 %v1291, 64
      %v1313 = vpop.permute.xlu0 %1312
      %1314 = vrot.lane.b32.xlu0 %v1292, 64
      %v1315 = vpop.permute.xlu0 %1314
      %1316 = vrot.lane.b32.xlu0 %v1293, 64
      %v1317 = vpop.permute.xlu0 %1316
      %vm1326 = vcmask 589312
      %1327 = vst.msk [vmem:[#allocation5] sm:$0xff] %vm1326, %v1303
      %1328 = vst.msk [vmem:[#allocation5 + $0x8] sm:$0xff] %vm1326, %v1305
      %1329 = vst.msk [vmem:[#allocation5 + $0x10] sm:$0xff] %vm1326, %v1307
      %1330 = vst.msk [vmem:[#allocation5 + $0x18] sm:$0xff] %vm1326, %v1309
      %1331 = vst.msk [vmem:[#allocation5 + $0x20] sm:$0xff] %vm1326, %v1311
      %1332 = vst.msk [vmem:[#allocation5 + $0x28] sm:$0xff] %vm1326, %v1313
      %1333 = vst.msk [vmem:[#allocation5 + $0x30] sm:$0xff] %vm1326, %v1315
      %1334 = vst.msk [vmem:[#allocation5 + $0x38] sm:$0xff] %vm1326, %v1317
      %v1335 = vld [vmem:[#allocation5] sm:$0xff]
      %v1336 = vld [vmem:[#allocation5 + $0x8] sm:$0xff]
      %v1337 = vld [vmem:[#allocation5 + $0x10] sm:$0xff]
      %v1338 = vld [vmem:[#allocation5 + $0x18] sm:$0xff]
      %v1339 = vld [vmem:[#allocation5 + $0x20] sm:$0xff]
      %v1340 = vld [vmem:[#allocation5 + $0x28] sm:$0xff]
      %v1341 = vld [vmem:[#allocation5 + $0x30] sm:$0xff]
      %v1342 = vld [vmem:[#allocation5 + $0x38] sm:$0xff]
      %v1343 = vld [vmem:[%s3] sm:$0xff]
      %v1344 = vld [vmem:[%s3 + $0x8] sm:$0xff]
      %v1345 = vld [vmem:[%s3 + $0x10] sm:$0xff]
      %v1346 = vld [vmem:[%s3 + $0x18] sm:$0xff]
      %v1347 = vld [vmem:[%s3 + $0x20] sm:$0xff]
      %v1348 = vld [vmem:[%s3 + $0x28] sm:$0xff]
      %v1349 = vld [vmem:[%s3 + $0x30] sm:$0xff]
      %v1350 = vld [vmem:[%s3 + $0x38] sm:$0xff]
      %v1351 = vld [vmem:[%s3 + $0x40] sm:$0xff]
      %v1352 = vld [vmem:[%s4] sm:$0x1]
      %v1354 = vlaneseq
      %v1355 = vshrl.u32 %v1354, 7
      %v1356 = vsub.s32 0, %v1355
      %v1357 = vrot.slane %v1352, %v1356
      %vm1359 = vcmask 588800
      %v1361 = vsel %vm1359, %v1335, 0
      %v1364 = vsel %vm1359, %v1336, 0
      %v1367 = vsel %vm1359, %v1337, 0
      %v1370 = vsel %vm1359, %v1338, 0
      %v1373 = vsel %vm1359, %v1339, 0
      %v1376 = vsel %vm1359, %v1340, 0
      %v1379 = vsel %vm1359, %v1341, 0
      %v1382 = vsel %vm1359, %v1342, 0
      %1384 = vmatprep.subr.mxu0 0.0
      %1385 = vmatpush1.msra.mxu0 %v1343
      %1386 = vmatprep.subr.mxu0 0.0
      %1387 = vmatpush1.msra.mxu0 %v1344
      %1388 = vmatprep.subr.mxu0 0.0
      %1389 = vmatpush1.msra.mxu0 %v1345
      %1390 = vmatprep.subr.mxu0 0.0
      %1391 = vmatpush1.msra.mxu0 %v1346
      %1392 = vmatprep.subr.mxu0 0.0
      %1393 = vmatpush1.msra.mxu0 %v1347
      %1394 = vmatprep.subr.mxu0 0.0
      %1395 = vmatpush1.msra.mxu0 %v1348
      %1396 = vmatprep.subr.mxu0 0.0
      %1397 = vmatpush1.msra.mxu0 %v1349
      %1398 = vmatprep.subr.mxu0 0.0
      %1399 = vmatpush1.msra.mxu0 %v1350
      %1400 = vmatprep.subr.mxu0 0.0
      %1401 = vmatpush1.msra.mxu0 %v1351
      %1402 = vmatprep.subr.mxu0 0.0
      %1403 = vmatpush1.msra.mxu0 0.0
      %1404 = vmatprep.subr.mxu0 0.0
      %1405 = vmatpush1.msra.mxu0 0.0
      %1406 = vmatprep.subr.mxu0 0.0
      %1407 = vmatpush1.msra.mxu0 0.0
      %1408 = vmatprep.subr.mxu0 0.0
      %1409 = vmatpush1.msra.mxu0 0.0
      %1410 = vmatprep.subr.mxu0 0.0
      %1411 = vmatpush1.msra.mxu0 0.0
      %1412 = vmatprep.subr.mxu0 0.0
      %1413 = vmatpush1.msra.mxu0 0.0
      %1414 = vmatprep.subr.mxu0 0.0
      %1415 = vmatpush1.msra.mxu0 0.0
      %1416 = vmatprep.subr.mxu0 0.0
      %1417 = vmatpush1.msra.mxu0 0.0
      %1418 = vmatprep.subr.mxu0 0.0
      %1419 = vmatpush1.msra.mxu0 0.0
      %1420 = vmatprep.subr.mxu0 0.0
      %1421 = vmatpush1.msra.mxu0 0.0
      %1422 = vmatprep.subr.mxu0 0.0
      %1423 = vmatpush1.msra.mxu0 0.0
      %1424 = vmatprep.subr.mxu0 0.0
      %1425 = vmatpush1.msra.mxu0 0.0
      %1426 = vmatprep.subr.mxu0 0.0
      %1427 = vmatpush1.msra.mxu0 0.0
      %1428 = vmatprep.subr.mxu0 0.0
      %1429 = vmatpush1.msra.mxu0 0.0
      %1430 = vmatprep.subr.mxu0 0.0
      %1431 = vmatpush1.msra.mxu0 0.0
      %1432 = vmatprep.subr.mxu0 0.0
      %1433 = vmatpush1.msra.mxu0 0.0
      %1434 = vmatprep.subr.mxu0 0.0
      %1435 = vmatpush1.msra.mxu0 0.0
      %1436 = vmatprep.subr.mxu0 0.0
      %1437 = vmatpush1.msra.mxu0 0.0
      %1438 = vmatprep.subr.mxu0 0.0
      %1439 = vmatpush1.msra.mxu0 0.0
      %1440 = vmatprep.subr.mxu0 0.0
      %1441 = vmatpush1.msra.mxu0 0.0
      %1442 = vmatprep.subr.mxu0 0.0
      %1443 = vmatpush1.msra.mxu0 0.0
      %1444 = vmatprep.subr.mxu0 0.0
      %1445 = vmatpush1.msra.mxu0 0.0
      %1446 = vmatprep.subr.mxu0 0.0
      %1447 = vmatpush1.msra.mxu0 0.0
      %1448 = vmatprep.mubr.f32.mxu0 0.0
      %1449 = vmatmul.mubr.f32.gmra.mrb[0].mxu0 %v1361
      %v1450 = vpop.f32.mrb[0].mxu0
      %v1451 = vadd.f32 %v1357, %v1450
      %v1452 = vpop.f32.mrb[0].mxu0
      %1453 = vmatprep.mubr.f32.mxu0 0.0
      %1454 = vmatmul.mubr.f32.gmra.mrb[0].mxu0 %v1364
      %v1455 = vpop.f32.mrb[0].mxu0
      %v1456 = vadd.f32 %v1357, %v1455
      %v1457 = vpop.f32.mrb[0].mxu0
      %1458 = vmatprep.mubr.f32.mxu0 0.0
      %1459 = vmatmul.mubr.f32.gmra.mrb[0].mxu0 %v1367
      %v1460 = vpop.f32.mrb[0].mxu0
      %v1461 = vadd.f32 %v1357, %v1460
      %v1462 = vpop.f32.mrb[0].mxu0
      %1463 = vmatprep.mubr.f32.mxu0 0.0
      %1464 = vmatmul.mubr.f32.gmra.mrb[0].mxu0 %v1370
      %v1465 = vpop.f32.mrb[0].mxu0
      %v1466 = vadd.f32 %v1357, %v1465
      %v1467 = vpop.f32.mrb[0].mxu0
      %1468 = vmatprep.mubr.f32.mxu0 0.0
      %1469 = vmatmul.mubr.f32.gmra.mrb[0].mxu0 %v1373
      %v1470 = vpop.f32.mrb[0].mxu0
      %v1471 = vadd.f32 %v1357, %v1470
      %v1472 = vpop.f32.mrb[0].mxu0
      %1473 = vmatprep.mubr.f32.mxu0 0.0
      %1474 = vmatmul.mubr.f32.gmra.mrb[0].mxu0 %v1376
      %v1475 = vpop.f32.mrb[0].mxu0
      %v1476 = vadd.f32 %v1357, %v1475
      %v1477 = vpop.f32.mrb[0].mxu0
      %1478 = vmatprep.mubr.f32.mxu0 0.0
      %1479 = vmatmul.mubr.f32.gmra.mrb[0].mxu0 %v1379
      %v1480 = vpop.f32.mrb[0].mxu0
      %v1481 = vadd.f32 %v1357, %v1480
      %v1482 = vpop.f32.mrb[0].mxu0
      %1483 = vmatprep.mubr.f32.mxu0 0.0
      %1484 = vmatmul.mubr.f32.gmra.mrb[0].mxu0 %v1382
      %v1485 = vpop.f32.mrb[0].mxu0
      %v1486 = vadd.f32 %v1357, %v1485
      %v1487 = vpop.f32.mrb[0].mxu0
      %1488 = vdwg.mxu0
      %v1489 = vmax.f32 %v1451, 0.0
      %v1490 = vmax.f32 %v1456, 0.0
      %v1491 = vmax.f32 %v1461, 0.0
      %v1492 = vmax.f32 %v1466, 0.0
      %v1493 = vmax.f32 %v1471, 0.0
      %v1494 = vmax.f32 %v1476, 0.0
      %v1495 = vmax.f32 %v1481, 0.0
      %v1496 = vmax.f32 %v1486, 0.0
      %1497 = vst.msk [vmem:[%s224] sm:$0xff] %vm893, %v1489
      %1498 = vst.msk [vmem:[%s224 + $0x8] sm:$0xff] %vm893, %v1490
      %1499 = vst.msk [vmem:[%s224 + $0x10] sm:$0xff] %vm893, %v1491
      %1500 = vst.msk [vmem:[%s224 + $0x18] sm:$0xff] %vm893, %v1492
      %1501 = vst.msk [vmem:[%s224 + $0x20] sm:$0xff] %vm893, %v1493
      %1502 = vst.msk [vmem:[%s224 + $0x28] sm:$0xff] %vm893, %v1494
      %1503 = vst.msk [vmem:[%s224 + $0x30] sm:$0xff] %vm893, %v1495
      %1504 = vst.msk [vmem:[%s224 + $0x38] sm:$0xff] %vm893, %v1496
      %p1505 = scmp.lt.s32.totalorder %s16, 1
      %s1506 = scalar_select %p1505, %s16, 1
      %s1507 = smul.addr %s1506, 8
      %s1508 = smul.addr %s1507, 8
      %s1509 = scalar_lea.vmem %s5, %s1508
      // Predicated region
      $region41: #{downsample_pallas.1} parent=39 // pred_check
        %p1510 = pneg %p144
      $region42: #{downsample_pallas.1} parent=39 // pred_check_branch
        %1512 = sbr.rel (%p1510) target = $region44
      $region43: #{downsample_pallas.1} parent=39 // pred_region
        _
      $region44: #{downsample_pallas.1} parent=39 // pred_fallthru
        _
    $region40: #{downsample_pallas.1} parent=5 // pred_fallthru
      _
    %p1513 = scmp.le.s32.totalorder 2, %s11
    // Predicated region
    $region45: #{downsample_pallas.1} parent=5 // pred_check
      %p1514 = pneg %p1513
    $region46: #{downsample_pallas.1} parent=5 // pred_check_branch
      %1516 = sbr.rel (%p1514) target = $region48
    $region47: #{downsample_pallas.1} parent=5 // pred_region
      %s1517 = ssub.s32 %s11, 2
      // Predicated region
      $region49: #{downsample_pallas.1} parent=47 // pred_check
        %p1518 = pneg %p150
      $region50: #{downsample_pallas.1} parent=47 // pred_check_branch
        %1520 = sbr.rel (%p1518) target = $region52
      $region51: #{downsample_pallas.1} parent=47 // pred_region
        %p1521 = scmp.lt.s32.totalorder %s17, 1
        %s1522 = scalar_select %p1521, %s17, 1
        %s1523 = smul.addr %s1522, 8
        %s1524 = smul.addr %s1523, 8
        %s1525 = scalar_lea.vmem %s5, %s1524
      $region52: #{downsample_pallas.1} parent=47 // pred_fallthru
        _
    $region48: #{downsample_pallas.1} parent=5 // pred_fallthru
      _
  $region6: #{downsample_pallas.1} parent=0 // loop_footer
    %s15 = sadd.s32 1, %s11
  $region7: #{downsample_pallas.1} parent=0 // loop_footer_branch
    %10 = sbr.rel target = $region3
  $region8: #{downsample_pallas.1} parent=0 // loop_exit
    _

</llo_original>
